<compile_context>
chip_gen: v7x
topology: tpu7x:2x2x1
jax: 0.10.0
libtpu: 0.0.40
codegen_flags: <defaults>
</compile_context>

<pallas_src>
import jax
import jax.numpy as jnp
import numpy as np
from jax.experimental import pallas as pl
from jax.experimental.pallas import tpu as pltpu


# ---------------------------------------------------------------------------
# Banded (Toeplitz) weight construction: conv3x3x3(pad=1, stride=1) becomes
#   out[d] = sum_{kd in 0..2}  xDpad[d + kd] @ band[kd]
# where xDpad is x flattened per depth slice to (D+2, H*W*Cin) with zero rows
# at d=0 and d=D+1, and band[kd] has shape (H*W*Cin, H*W*Cout) with
#   band[kd][(hin*W+win)*Cin+ci, (h*W+w)*Cout+co] = wt[kd, hin-h+1, win-w+1, ci, co]
# only for in-range (hin, win); out-of-range taps (the H/W zero padding) are
# simply not present in the band.
# ---------------------------------------------------------------------------
def _band_weight(wt, H, W):
    kD, kH, kW, Cin, Cout = (int(s) for s in wt.shape)   # DHWIO
    K = H * W * Cin
    N = H * W * Cout
    kd, kh, kw, h, w, ci, co = np.meshgrid(
        np.arange(kD), np.arange(kH), np.arange(kW),
        np.arange(H), np.arange(W), np.arange(Cin), np.arange(Cout),
        indexing="ij")
    hin = h + kh - 1
    win = w + kw - 1
    valid = (hin >= 0) & (hin < H) & (win >= 0) & (win < W)
    rows = np.clip((hin * W + win) * Cin + ci, 0, K - 1)     # clamped; invalid
    cols = (h * W + w) * Cout + co                           # entries add 0.0
    vals = wt[kd, kh, kw, ci, co] * jnp.asarray(valid, jnp.float32)
    band = jnp.zeros((kD, K, N), jnp.float32)
    band = band.at[kd.ravel(), rows.ravel(), cols.ravel()].add(vals.ravel())
    return band


def _fold_bn(bn, eps=1e-5):
    scale = bn["gamma"] / jnp.sqrt(bn["var"] + eps)
    bias = bn["beta"] - bn["mean"] * scale
    return scale, bias


# ---------------------------------------------------------------------------
# Fused kernel (one grid step == one batch sample).
#   x_ref  : (D, H*W*C)          f32, lane-dense activation rows (also residual)
#   w1_ref : (3, H*W*C, H*W*C)   bf16 banded conv1 weight
#   w2_ref : (3, H*W*C, H*W*C)   bf16 banded conv2 weight
#   s*/b*  : (1, H*W*C)          f32 folded-BN scale / bias (tiled over H*W)
#   out_ref: (D, H*W*C)          f32
#   xpad_ref, h1pad_ref : (D+2, H*W*C) bf16 VMEM scratch (D-padded activations)
# ---------------------------------------------------------------------------
def _basic_block_kernel(x_ref, w1_ref, w2_ref, s1_ref, b1_ref, s2_ref, b2_ref,
                        out_ref, xpad_ref, h1pad_ref):
    D, HWC = x_ref.shape
    zero_row = jnp.zeros((1, HWC), jnp.bfloat16)

    # Stage the conv1 input (and residual source) in VMEM, zero-padded along D.
    xpad_ref[0:1, :] = zero_row
    xpad_ref[D + 1:D + 2, :] = zero_row
    xpad_ref[1:D + 1, :] = x_ref[...].astype(jnp.bfloat16)

    # conv1 as 3 lane-dense banded matmuls (bf16 -> f32 acc), + bn1 + relu.
    acc = jnp.zeros((D, HWC), jnp.float32)
    for kd in range(3):
        acc = acc + jnp.dot(xpad_ref[kd:kd + D, :], w1_ref[kd],
                            preferred_element_type=jnp.float32)
    h1 = jnp.maximum(acc * s1_ref[...] + b1_ref[...], 0.0)

    # Intermediate activation never leaves VMEM.
    h1pad_ref[0:1, :] = zero_row
    h1pad_ref[D + 1:D + 2, :] = zero_row
    h1pad_ref[1:D + 1, :] = h1.astype(jnp.bfloat16)

    # conv2 + bn2 + residual add (f32) + relu.
    acc = jnp.zeros((D, HWC), jnp.float32)
    for kd in range(3):
        acc = acc + jnp.dot(h1pad_ref[kd:kd + D, :], w2_ref[kd],
                            preferred_element_type=jnp.float32)
    y = acc * s2_ref[...] + b2_ref[...] + x_ref[...].astype(jnp.float32)
    out_ref[...] = jnp.maximum(y, 0.0).astype(out_ref.dtype)


def basic_block_forward(x_ncdhw, params):
    """BasicBlock forward (stride=1, downsample=None).  Input/output: NCDHW."""
    N, C, D, H, W = x_ncdhw.shape
    Cout = int(params["w1"].shape[-1])
    assert Cout == C, "stride=1 / downsample=None BasicBlock requires Cin==Cout"
    HWC = H * W * C

    # NCDHW -> NDHWC, flattened to lane-dense (N, D, H*W*C) rows (free reshape).
    x2d = jnp.transpose(x_ncdhw, (0, 2, 3, 4, 1)).reshape(N, D, HWC)

    s1, b1 = _fold_bn(params["bn1"])
    s2, b2 = _fold_bn(params["bn2"])
    wb1 = _band_weight(params["w1"], H, W).astype(jnp.bfloat16)
    wb2 = _band_weight(params["w2"], H, W).astype(jnp.bfloat16)
    s1r = jnp.tile(s1, H * W).reshape(1, HWC)
    b1r = jnp.tile(b1, H * W).reshape(1, HWC)
    s2r = jnp.tile(s2, H * W).reshape(1, HWC)
    b2r = jnp.tile(b2, H * W).reshape(1, HWC)

    const3 = lambda n: (0, 0, 0)
    const2 = lambda n: (0, 0)

    out2d = pl.pallas_call(
        _basic_block_kernel,
        out_shape=jax.ShapeDtypeStruct((N, D, HWC), x_ncdhw.dtype),
        grid=(N,),
        in_specs=[
            pl.BlockSpec((None, D, HWC), lambda n: (n, 0, 0)),   # x (+residual)
            pl.BlockSpec((3, HWC, HWC), const3),                 # banded w1
            pl.BlockSpec((3, HWC, HWC), const3),                 # banded w2
            pl.BlockSpec((1, HWC), const2),                      # bn1 scale
            pl.BlockSpec((1, HWC), const2),                      # bn1 bias
            pl.BlockSpec((1, HWC), const2),                      # bn2 scale
            pl.BlockSpec((1, HWC), const2),                      # bn2 bias
        ],
        out_specs=pl.BlockSpec((None, D, HWC), lambda n: (n, 0, 0)),
        scratch_shapes=[
            pltpu.VMEM((D + 2, HWC), jnp.bfloat16),   # D-padded x
            pltpu.VMEM((D + 2, HWC), jnp.bfloat16),   # D-padded conv1 output
        ],
        compiler_params=pltpu.CompilerParams(
            dimension_semantics=("parallel",),        # batch is independent
            vmem_limit_bytes=64 * 1024 * 1024),
    )(x2d, wb1, wb2, s1r, b1r, s2r, b2r)

    return jnp.transpose(out2d.reshape(N, D, H, W, C), (0, 4, 1, 2, 3))


# ---------------------------------------------------------------------------
# Pure-JAX reference (inference-mode BN, f32) and synthetic params.
# ---------------------------------------------------------------------------
def _reference_forward(x_ncdhw, params, eps=1e-5):
    x = jnp.transpose(x_ncdhw, (0, 2, 3, 4, 1))

    def conv(v, w):
        return jax.lax.conv_general_dilated(
            v, w, window_strides=(1, 1, 1),
            padding=((1, 1), (1, 1), (1, 1)),
            dimension_numbers=("NDHWC", "DHWIO", "NDHWC"))

    def bn(v, p):
        scale = p["gamma"] / jnp.sqrt(p["var"] + eps)
        return v * scale + (p["beta"] - p["mean"] * scale)

    out = jax.nn.relu(bn(conv(x, params["w1"]), params["bn1"]))
    out = bn(conv(out, params["w2"]), params["bn2"]) + x
    out = jax.nn.relu(out)
    return jnp.transpose(out, (0, 4, 1, 2, 3))


def make_params(key, in_planes, planes):
    ks = jax.random.split(key, 10)
    w1 = 0.1 * jax.random.normal(ks[0], (3, 3, 3, in_planes, planes), jnp.float32)
    w2 = 0.1 * jax.random.normal(ks[1], (3, 3, 3, planes, planes), jnp.float32)
    bn1 = dict(
        gamma=0.5 + jax.random.uniform(ks[2], (planes,), jnp.float32),
        beta=0.1 * jax.random.normal(ks[3], (planes,), jnp.float32),
        mean=0.1 * jax.random.normal(ks[4], (planes,), jnp.float32),
        var=0.5 + jax.random.uniform(ks[5], (planes,), jnp.float32),
    )
    bn2 = dict(
        gamma=0.5 + jax.random.uniform(ks[6], (planes,), jnp.float32),
        beta=0.1 * jax.random.normal(ks[7], (planes,), jnp.float32),
        mean=0.1 * jax.random.normal(ks[8], (planes,), jnp.float32),
        var=0.5 + jax.random.uniform(ks[9], (planes,), jnp.float32),
    )
    return dict(w1=w1, w2=w2, bn1=bn1, bn2=bn2)


if __name__ == "__main__":
    key = jax.random.PRNGKey(0)
    k_x, k_p = jax.random.split(key)

    N, C, D, H, W = 2, 4, 8, 8, 8            # in_planes = planes = 4, stride = 1
    x = jax.random.normal(k_x, (N, C, D, H, W), jnp.float32)   # NCDHW, as PyTorch
    params = make_params(k_p, C, C)

    out = jax.block_until_ready(basic_block_forward(x, params))
    ref = jax.block_until_ready(_reference_forward(x, params))

    assert out.shape == (N, C, D, H, W)
    max_err = float(jnp.max(jnp.abs(out - ref)))
    # bf16 matmul operands (f32 accumulation/epilogue) -> relaxed tolerance.
    assert jnp.allclose(out, ref, atol=5e-2, rtol=5e-2), max_err

    print("KERNEL_OK")
</pallas_src>

<mosaic_0001>
module attributes {stable_mosaic.version = 11 : i64} {
  func.func @_basic_block_kernel(%arg0: i32, %arg1: memref<1x8x256xf32, #tpu.memory_space<vmem>>, %arg2: memref<3x256x256xbf16, #tpu.memory_space<vmem>>, %arg3: memref<3x256x256xbf16, #tpu.memory_space<vmem>>, %arg4: memref<1x256xf32, #tpu.memory_space<vmem>>, %arg5: memref<1x256xf32, #tpu.memory_space<vmem>>, %arg6: memref<1x256xf32, #tpu.memory_space<vmem>>, %arg7: memref<1x256xf32, #tpu.memory_space<vmem>>, %arg8: memref<1x8x256xf32, #tpu.memory_space<vmem>>, %arg9: memref<10x256xbf16, #tpu.memory_space<vmem>>, %arg10: memref<10x256xbf16, #tpu.memory_space<vmem>>) attributes {dimension_semantics = [#tpu.dimension_semantics<parallel>], iteration_bounds = array<i64: 2>, scalar_prefetch = 0 : i64, scratch_operands = 2 : i64, tpu.core_type = #tpu.core_type<tc>, window_params = [{transform_indices = @transform_0, window_bounds = array<i64: 1, 8, 256>}, {pipeline_mode = #tpu.pipeline_mode<synchronous>, transform_indices = @transform_1, window_bounds = array<i64: 3, 256, 256>}, {pipeline_mode = #tpu.pipeline_mode<synchronous>, transform_indices = @transform_2, window_bounds = array<i64: 3, 256, 256>}, {pipeline_mode = #tpu.pipeline_mode<synchronous>, transform_indices = @transform_3, window_bounds = array<i64: 1, 256>}, {pipeline_mode = #tpu.pipeline_mode<synchronous>, transform_indices = @transform_4, window_bounds = array<i64: 1, 256>}, {pipeline_mode = #tpu.pipeline_mode<synchronous>, transform_indices = @transform_5, window_bounds = array<i64: 1, 256>}, {pipeline_mode = #tpu.pipeline_mode<synchronous>, transform_indices = @transform_6, window_bounds = array<i64: 1, 256>}, {transform_indices = @transform_7, window_bounds = array<i64: 1, 8, 256>}]} {
    %cst = arith.constant 0.000000e+00 : bf16
    %0 = vector.broadcast %cst : bf16 to vector<1x256xbf16>
    %c0 = arith.constant 0 : index
    %c0_0 = arith.constant 0 : index
    %1 = vector.load %arg9[%c0, %c0_0] : memref<10x256xbf16, #tpu.memory_space<vmem>>, vector<1x256xbf16>
    tpu.vector_store %arg9[%c0, %c0_0], %0 {strides = array<i32>} : memref<10x256xbf16, #tpu.memory_space<vmem>>, vector<1x256xbf16>,
    %c9 = arith.constant 9 : index
    %c0_1 = arith.constant 0 : index
    %2 = vector.load %arg9[%c9, %c0_1] : memref<10x256xbf16, #tpu.memory_space<vmem>>, vector<1x256xbf16>
    tpu.vector_store %arg9[%c9, %c0_1], %0 {strides = array<i32>} : memref<10x256xbf16, #tpu.memory_space<vmem>>, vector<1x256xbf16>,
    %c0_2 = arith.constant 0 : index
    %c0_3 = arith.constant 0 : index
    %c0_4 = arith.constant 0 : index
    %3 = vector.load %arg1[%c0_2, %c0_3, %c0_4] : memref<1x8x256xf32, #tpu.memory_space<vmem>>, vector<1x8x256xf32>
    %4 = vector.shape_cast %3 : vector<1x8x256xf32> to vector<8x256xf32>
    %5 = arith.truncf %4 : vector<8x256xf32> to vector<8x256xbf16>
    %c1 = arith.constant 1 : index
    %c0_5 = arith.constant 0 : index
    %6 = vector.load %arg9[%c1, %c0_5] : memref<10x256xbf16, #tpu.memory_space<vmem>>, vector<8x256xbf16>
    tpu.vector_store %arg9[%c1, %c0_5], %5 {strides = array<i32>} : memref<10x256xbf16, #tpu.memory_space<vmem>>, vector<8x256xbf16>,
    %cst_6 = arith.constant 0.000000e+00 : f32
    %7 = vector.broadcast %cst_6 : f32 to vector<8x256xf32>
    %c0_7 = arith.constant 0 : index
    %c0_8 = arith.constant 0 : index
    %8 = vector.load %arg9[%c0_7, %c0_8] : memref<10x256xbf16, #tpu.memory_space<vmem>>, vector<8x256xbf16>
    %c0_9 = arith.constant 0 : index
    %c0_10 = arith.constant 0 : index
    %c0_11 = arith.constant 0 : index
    %9 = vector.load %arg2[%c0_9, %c0_10, %c0_11] : memref<3x256x256xbf16, #tpu.memory_space<vmem>>, vector<1x256x256xbf16>
    %10 = vector.shape_cast %9 : vector<1x256x256xbf16> to vector<256x256xbf16>
    %cst_12 = arith.constant dense<0.000000e+00> : vector<8x256xf32>
    %11 = tpu.matmul %8, %10, %cst_12 {dimension_numbers = #tpu.dot_dimension_numbers<[1], [0], [0], [1], [0, 0, 1, 1], [], []>} : vector<8x256xbf16>, vector<256x256xbf16>, vector<8x256xf32> -> vector<8x256xf32>
    %12 = arith.addf %7, %11 : vector<8x256xf32>
    %c1_13 = arith.constant 1 : index
    %c0_14 = arith.constant 0 : index
    %13 = vector.load %arg9[%c1_13, %c0_14] : memref<10x256xbf16, #tpu.memory_space<vmem>>, vector<8x256xbf16>
    %c1_15 = arith.constant 1 : index
    %c0_16 = arith.constant 0 : index
    %c0_17 = arith.constant 0 : index
    %14 = vector.load %arg2[%c1_15, %c0_16, %c0_17] : memref<3x256x256xbf16, #tpu.memory_space<vmem>>, vector<1x256x256xbf16>
    %15 = vector.shape_cast %14 : vector<1x256x256xbf16> to vector<256x256xbf16>
    %cst_18 = arith.constant dense<0.000000e+00> : vector<8x256xf32>
    %16 = tpu.matmul %13, %15, %cst_18 {dimension_numbers = #tpu.dot_dimension_numbers<[1], [0], [0], [1], [0, 0, 1, 1], [], []>} : vector<8x256xbf16>, vector<256x256xbf16>, vector<8x256xf32> -> vector<8x256xf32>
    %17 = arith.addf %12, %16 : vector<8x256xf32>
    %c2 = arith.constant 2 : index
    %c0_19 = arith.constant 0 : index
    %18 = vector.load %arg9[%c2, %c0_19] : memref<10x256xbf16, #tpu.memory_space<vmem>>, vector<8x256xbf16>
    %c2_20 = arith.constant 2 : index
    %c0_21 = arith.constant 0 : index
    %c0_22 = arith.constant 0 : index
    %19 = vector.load %arg2[%c2_20, %c0_21, %c0_22] : memref<3x256x256xbf16, #tpu.memory_space<vmem>>, vector<1x256x256xbf16>
    %20 = vector.shape_cast %19 : vector<1x256x256xbf16> to vector<256x256xbf16>
    %cst_23 = arith.constant dense<0.000000e+00> : vector<8x256xf32>
    %21 = tpu.matmul %18, %20, %cst_23 {dimension_numbers = #tpu.dot_dimension_numbers<[1], [0], [0], [1], [0, 0, 1, 1], [], []>} : vector<8x256xbf16>, vector<256x256xbf16>, vector<8x256xf32> -> vector<8x256xf32>
    %22 = arith.addf %17, %21 : vector<8x256xf32>
    %c0_24 = arith.constant 0 : index
    %c0_25 = arith.constant 0 : index
    %23 = vector.load %arg4[%c0_24, %c0_25] : memref<1x256xf32, #tpu.memory_space<vmem>>, vector<1x256xf32>
    %24 = vector.broadcast %23 : vector<1x256xf32> to vector<8x256xf32>
    %25 = arith.mulf %22, %24 : vector<8x256xf32>
    %c0_26 = arith.constant 0 : index
    %c0_27 = arith.constant 0 : index
    %26 = vector.load %arg5[%c0_26, %c0_27] : memref<1x256xf32, #tpu.memory_space<vmem>>, vector<1x256xf32>
    %27 = vector.broadcast %26 : vector<1x256xf32> to vector<8x256xf32>
    %28 = arith.addf %25, %27 : vector<8x256xf32>
    %cst_28 = arith.constant 0.000000e+00 : f32
    %29 = vector.broadcast %cst_28 : f32 to vector<8x256xf32>
    %30 = arith.maximumf %28, %29 : vector<8x256xf32>
    %c0_29 = arith.constant 0 : index
    %c0_30 = arith.constant 0 : index
    %31 = vector.load %arg10[%c0_29, %c0_30] : memref<10x256xbf16, #tpu.memory_space<vmem>>, vector<1x256xbf16>
    tpu.vector_store %arg10[%c0_29, %c0_30], %0 {strides = array<i32>} : memref<10x256xbf16, #tpu.memory_space<vmem>>, vector<1x256xbf16>,
    %c9_31 = arith.constant 9 : index
    %c0_32 = arith.constant 0 : index
    %32 = vector.load %arg10[%c9_31, %c0_32] : memref<10x256xbf16, #tpu.memory_space<vmem>>, vector<1x256xbf16>
    tpu.vector_store %arg10[%c9_31, %c0_32], %0 {strides = array<i32>} : memref<10x256xbf16, #tpu.memory_space<vmem>>, vector<1x256xbf16>,
    %33 = arith.truncf %30 : vector<8x256xf32> to vector<8x256xbf16>
    %c1_33 = arith.constant 1 : index
    %c0_34 = arith.constant 0 : index
    %34 = vector.load %arg10[%c1_33, %c0_34] : memref<10x256xbf16, #tpu.memory_space<vmem>>, vector<8x256xbf16>
    tpu.vector_store %arg10[%c1_33, %c0_34], %33 {strides = array<i32>} : memref<10x256xbf16, #tpu.memory_space<vmem>>, vector<8x256xbf16>,
    %cst_35 = arith.constant 0.000000e+00 : f32
    %35 = vector.broadcast %cst_35 : f32 to vector<8x256xf32>
    %c0_36 = arith.constant 0 : index
    %c0_37 = arith.constant 0 : index
    %36 = vector.load %arg10[%c0_36, %c0_37] : memref<10x256xbf16, #tpu.memory_space<vmem>>, vector<8x256xbf16>
    %c0_38 = arith.constant 0 : index
    %c0_39 = arith.constant 0 : index
    %c0_40 = arith.constant 0 : index
    %37 = vector.load %arg3[%c0_38, %c0_39, %c0_40] : memref<3x256x256xbf16, #tpu.memory_space<vmem>>, vector<1x256x256xbf16>
    %38 = vector.shape_cast %37 : vector<1x256x256xbf16> to vector<256x256xbf16>
    %cst_41 = arith.constant dense<0.000000e+00> : vector<8x256xf32>
    %39 = tpu.matmul %36, %38, %cst_41 {dimension_numbers = #tpu.dot_dimension_numbers<[1], [0], [0], [1], [0, 0, 1, 1], [], []>} : vector<8x256xbf16>, vector<256x256xbf16>, vector<8x256xf32> -> vector<8x256xf32>
    %40 = arith.addf %35, %39 : vector<8x256xf32>
    %c1_42 = arith.constant 1 : index
    %c0_43 = arith.constant 0 : index
    %41 = vector.load %arg10[%c1_42, %c0_43] : memref<10x256xbf16, #tpu.memory_space<vmem>>, vector<8x256xbf16>
    %c1_44 = arith.constant 1 : index
    %c0_45 = arith.constant 0 : index
    %c0_46 = arith.constant 0 : index
    %42 = vector.load %arg3[%c1_44, %c0_45, %c0_46] : memref<3x256x256xbf16, #tpu.memory_space<vmem>>, vector<1x256x256xbf16>
    %43 = vector.shape_cast %42 : vector<1x256x256xbf16> to vector<256x256xbf16>
    %cst_47 = arith.constant dense<0.000000e+00> : vector<8x256xf32>
    %44 = tpu.matmul %41, %43, %cst_47 {dimension_numbers = #tpu.dot_dimension_numbers<[1], [0], [0], [1], [0, 0, 1, 1], [], []>} : vector<8x256xbf16>, vector<256x256xbf16>, vector<8x256xf32> -> vector<8x256xf32>
    %45 = arith.addf %40, %44 : vector<8x256xf32>
    %c2_48 = arith.constant 2 : index
    %c0_49 = arith.constant 0 : index
    %46 = vector.load %arg10[%c2_48, %c0_49] : memref<10x256xbf16, #tpu.memory_space<vmem>>, vector<8x256xbf16>
    %c2_50 = arith.constant 2 : index
    %c0_51 = arith.constant 0 : index
    %c0_52 = arith.constant 0 : index
    %47 = vector.load %arg3[%c2_50, %c0_51, %c0_52] : memref<3x256x256xbf16, #tpu.memory_space<vmem>>, vector<1x256x256xbf16>
    %48 = vector.shape_cast %47 : vector<1x256x256xbf16> to vector<256x256xbf16>
    %cst_53 = arith.constant dense<0.000000e+00> : vector<8x256xf32>
    %49 = tpu.matmul %46, %48, %cst_53 {dimension_numbers = #tpu.dot_dimension_numbers<[1], [0], [0], [1], [0, 0, 1, 1], [], []>} : vector<8x256xbf16>, vector<256x256xbf16>, vector<8x256xf32> -> vector<8x256xf32>
    %50 = arith.addf %45, %49 : vector<8x256xf32>
    %c0_54 = arith.constant 0 : index
    %c0_55 = arith.constant 0 : index
    %51 = vector.load %arg6[%c0_54, %c0_55] : memref<1x256xf32, #tpu.memory_space<vmem>>, vector<1x256xf32>
    %52 = vector.broadcast %51 : vector<1x256xf32> to vector<8x256xf32>
    %53 = arith.mulf %50, %52 : vector<8x256xf32>
    %c0_56 = arith.constant 0 : index
    %c0_57 = arith.constant 0 : index
    %54 = vector.load %arg7[%c0_56, %c0_57] : memref<1x256xf32, #tpu.memory_space<vmem>>, vector<1x256xf32>
    %55 = vector.broadcast %54 : vector<1x256xf32> to vector<8x256xf32>
    %56 = arith.addf %53, %55 : vector<8x256xf32>
    %c0_58 = arith.constant 0 : index
    %c0_59 = arith.constant 0 : index
    %c0_60 = arith.constant 0 : index
    %57 = vector.load %arg1[%c0_58, %c0_59, %c0_60] : memref<1x8x256xf32, #tpu.memory_space<vmem>>, vector<1x8x256xf32>
    %58 = vector.shape_cast %57 : vector<1x8x256xf32> to vector<8x256xf32>
    %59 = arith.addf %56, %58 : vector<8x256xf32>
    %cst_61 = arith.constant 0.000000e+00 : f32
    %60 = vector.broadcast %cst_61 : f32 to vector<8x256xf32>
    %61 = arith.maximumf %59, %60 : vector<8x256xf32>
    %c0_62 = arith.constant 0 : index
    %c0_63 = arith.constant 0 : index
    %c0_64 = arith.constant 0 : index
    %62 = vector.load %arg8[%c0_62, %c0_63, %c0_64] : memref<1x8x256xf32, #tpu.memory_space<vmem>>, vector<1x8x256xf32>
    %63 = vector.shape_cast %62 : vector<1x8x256xf32> to vector<8x256xf32>
    %64 = vector.shape_cast %61 : vector<8x256xf32> to vector<1x8x256xf32>
    tpu.vector_store %arg8[%c0_62, %c0_63, %c0_64], %64 {strides = array<i32>} : memref<1x8x256xf32, #tpu.memory_space<vmem>>, vector<1x8x256xf32>,
    return
  }
  func.func @transform_0(%arg0: i32) -> (i32, i32, i32) {
    %c0_i32 = arith.constant 0 : i32
    %c0_i32_0 = arith.constant 0 : i32
    %c0_i32_1 = arith.constant 0 : i32
    return %arg0, %c0_i32, %c0_i32_0 : i32, i32, i32
  }
  func.func @transform_1(%arg0: i32) -> (i32, i32, i32) {
    %c0_i32 = arith.constant 0 : i32
    %c0_i32_0 = arith.constant 0 : i32
    %c0_i32_1 = arith.constant 0 : i32
    %c0_i32_2 = arith.constant 0 : i32
    return %c0_i32, %c0_i32_0, %c0_i32_1 : i32, i32, i32
  }
  func.func @transform_2(%arg0: i32) -> (i32, i32, i32) {
    %c0_i32 = arith.constant 0 : i32
    %c0_i32_0 = arith.constant 0 : i32
    %c0_i32_1 = arith.constant 0 : i32
    %c0_i32_2 = arith.constant 0 : i32
    return %c0_i32, %c0_i32_0, %c0_i32_1 : i32, i32, i32
  }
  func.func @transform_3(%arg0: i32) -> (i32, i32) {
    %c0_i32 = arith.constant 0 : i32
    %c0_i32_0 = arith.constant 0 : i32
    %c0_i32_1 = arith.constant 0 : i32
    return %c0_i32, %c0_i32_0 : i32, i32
  }
  func.func @transform_4(%arg0: i32) -> (i32, i32) {
    %c0_i32 = arith.constant 0 : i32
    %c0_i32_0 = arith.constant 0 : i32
    %c0_i32_1 = arith.constant 0 : i32
    return %c0_i32, %c0_i32_0 : i32, i32
  }
  func.func @transform_5(%arg0: i32) -> (i32, i32) {
    %c0_i32 = arith.constant 0 : i32
    %c0_i32_0 = arith.constant 0 : i32
    %c0_i32_1 = arith.constant 0 : i32
    return %c0_i32, %c0_i32_0 : i32, i32
  }
  func.func @transform_6(%arg0: i32) -> (i32, i32) {
    %c0_i32 = arith.constant 0 : i32
    %c0_i32_0 = arith.constant 0 : i32
    %c0_i32_1 = arith.constant 0 : i32
    return %c0_i32, %c0_i32_0 : i32, i32
  }
  func.func @transform_7(%arg0: i32) -> (i32, i32, i32) {
    %c0_i32 = arith.constant 0 : i32
    %c0_i32_0 = arith.constant 0 : i32
    %c0_i32_1 = arith.constant 0 : i32
    return %arg0, %c0_i32, %c0_i32_0 : i32, i32, i32
  }
}

</mosaic_0001>

<llo_original>
// kernel: tpu_custom_call.1
$region0: #{tpu_custom_call.1}
  #allocation0 [shape = 'u32[]', space=smem, size = 0x4, offset = 0x4, fixed_abs, tag = 'smem constant byte address 0x4 - core index']
  #allocation1 [shape = 'u32[144,128]{1,0:T(1,128)}', space=vmem, size = 0x12000, scoped, tag = 'internal scratch']
  #allocation2 [shape = 'bf16[10,256]{1,0:T(8,128)(2,1)}', space=vmem, size = 0x2000, scoped, tag = 'scratch operand']
  #allocation3 [shape = 'bf16[10,256]{1,0:T(8,128)(2,1)}', space=vmem, size = 0x2000, scoped, tag = 'scratch operand']
  %s0 = inlined_call_operand.hbm [shape: f32[2,8,256], index: 0, kind: input, shape index: {}]
  %s1 = inlined_call_operand.hbm [shape: bf16[3,256,256], index: 1, kind: input, shape index: {}]
  %s2 = inlined_call_operand.hbm [shape: bf16[3,256,256], index: 2, kind: input, shape index: {}]
  %s3 = inlined_call_operand.hbm [shape: f32[1,256], index: 3, kind: input, shape index: {}]
  %s4 = inlined_call_operand.hbm [shape: f32[1,256], index: 4, kind: input, shape index: {}]
  %s5 = inlined_call_operand.hbm [shape: f32[1,256], index: 5, kind: input, shape index: {}]
  %s6 = inlined_call_operand.hbm [shape: f32[1,256], index: 6, kind: input, shape index: {}]
  %s7 = inlined_call_operand.hbm [shape: f32[2,8,256], index: 7, kind: output, shape index: {}]
  %s8 = sld [smem:[#allocation0]]
  $region89: #{tpu_custom_call.1} parent=0
    _
  %s10 = ssub.s32 1, %s8
  %s11 = scalar_select 0, %s10, %s8
  $region1: #{tpu_custom_call.1} parent=0
    #allocation4 [shape = 'u8[16384]{0}', space=vmem, size = 0x4000, scoped, tag = 'input window, operand 0']
    #allocation5 [shape = 's32[2]{0}', space=sflag, size = 0x8, scoped, tag = 'scoped memory for tpu_custom_call.1']
    #allocation6 [shape = 's32[2]{0}', space=sflag, size = 0x8, scoped, tag = 'scoped memory for tpu_custom_call.1']
    #allocation7 [shape = 'u8[393216]{0}', space=vmem, size = 0x60000, scoped, tag = 'input window, operand 1, single buffered']
    #allocation8 [shape = 's32[1]{0}', space=sflag, size = 0x4, scoped, tag = 'scoped memory for tpu_custom_call.1']
    #allocation9 [shape = 'u8[393216]{0}', space=vmem, size = 0x60000, scoped, tag = 'input window, operand 2, single buffered']
    #allocation10 [shape = 'u8[1024]{0}', space=vmem, size = 0x400, scoped, tag = 'input window, operand 3, single buffered']
    #allocation11 [shape = 's32[1]{0}', space=sflag, size = 0x4, scoped, tag = 'scoped memory for tpu_custom_call.1']
    #allocation12 [shape = 'u8[1024]{0}', space=vmem, size = 0x400, scoped, tag = 'input window, operand 4, single buffered']
    #allocation13 [shape = 'u8[1024]{0}', space=vmem, size = 0x400, scoped, tag = 'input window, operand 5, single buffered']
    #allocation14 [shape = 's32[1]{0}', space=sflag, size = 0x4, scoped, tag = 'scoped memory for tpu_custom_call.1']
    #allocation15 [shape = 'u8[1024]{0}', space=vmem, size = 0x400, scoped, tag = 'input window, operand 6, single buffered']
    #allocation16 [shape = 'u8[16384]{0}', space=vmem, size = 0x4000, scoped, tag = 'output window, operand 0']
    %12 = vsyncpa [#allocation5], 0
    %s13 = scalar_lea.sflag [#allocation5], 1
    %14 = vsyncpa %s13, 0
    %15 = vsyncpa [#allocation8], 0
    %16 = vsyncpa [#allocation11], 0
    %17 = vsyncpa [#allocation14], 0
    %18 = vsyncpa [#allocation6], 0
    %s19 = scalar_lea.sflag [#allocation6], 1
    %20 = vsyncpa %s19, 0
    loop: start=0, step=1, limit=4
    $region2: #{tpu_custom_call.1} parent=1 // loop_pre_header
      _
    $region3: #{tpu_custom_call.1} parent=1 // loop_header
      %s22 = sphi 0, %s26
      %p23 = scmp.ge.s32.totalorder %s22, 4
      %s32 = sphi 0, %s34
      %s35 = sphi 0, %s32
      %s36 = sphi 0, %s35
      %s52 = sphi 0, %s36
      %s56 = sphi 0, %s56
      %s58 = sphi 0, %s56
      %s59 = sphi 0, %s58
      %s73 = sphi 0, %s59
      %s77 = sphi 0, %s77
      %s79 = sphi 0, %s77
      %s80 = sphi 0, %s79
      %s94 = sphi 0, %s80
      %s98 = sphi 0, %s98
      %s100 = sphi 0, %s98
      %s101 = sphi 0, %s100
      %s115 = sphi 0, %s101
      %s119 = sphi 0, %s119
      %s121 = sphi 0, %s119
      %s122 = sphi 0, %s121
      %s136 = sphi 0, %s122
      %s140 = sphi 0, %s140
      %s142 = sphi 0, %s140
      %s143 = sphi 0, %s142
      %s157 = sphi 0, %s143
      %s161 = sphi 0, %s161
      %s163 = sphi 0, %s161
      %s164 = sphi 0, %s163
      %s178 = sphi 0, %s164
      %s184 = sphi 0, %s186
      %s187 = sphi 0, %s184
      %s188 = sphi 0, %s187
      %s204 = sphi 0, %s188
    $region4: #{tpu_custom_call.1} parent=1 // loop_header_branch
      %25 = sbr.rel (%p23) target = $region8
    $region5: #{tpu_custom_call.1} parent=1 // loop_body
      %s27 = ssub.s32 %s22, 1
      %s28 = ssub.s32 %s22, 2
      %s29 = sadd.s32 %s22, 1
      %s30 = ssub.s32 %s22, %s29
      %p31 = scmp.eq.s32.totalorder %s30, 0
      %s33 = sadd.s32 %s32, 1
      %s34 = scalar_select %p31, %s32, %s33
      %p37 = pneg %p31
      %p38 = scmp.eq.s32.totalorder %s22, 1
      %p39 = por %p37, %p38
      %p40 = scmp.ne.s32.totalorder %s32, %s35
      %p41 = scmp.eq.s32.totalorder %s22, 0
      %p42 = por %p40, %p41
      %p43 = scmp.ne.s32.totalorder %s32, %s35
      %p44 = scmp.eq.s32.totalorder %s27, 1
      %p45 = por %p43, %p44
      %p46 = scmp.ne.s32.totalorder %s35, %s36
      %p47 = scmp.eq.s32.totalorder %s27, 0
      %p48 = por %p46, %p47
      %p49 = scmp.ne.s32.totalorder %s35, %s36
      %p50 = scmp.eq.s32.totalorder %s28, 1
      %p51 = por %p49, %p50
      %p53 = scmp.ne.s32.totalorder %s36, %s52
      %p54 = scmp.eq.s32.totalorder %s28, 0
      %p55 = por %p53, %p54
      %s57 = sadd.s32 %s56, 1
      %p60 = scmp.eq.s32.totalorder %s22, 1
      %p61 = scmp.ne.s32.totalorder %s56, %s58
      %p62 = scmp.eq.s32.totalorder %s22, 0
      %p63 = por %p61, %p62
      %p64 = scmp.ne.s32.totalorder %s56, %s58
      %p65 = scmp.eq.s32.totalorder %s27, 1
      %p66 = por %p64, %p65
      %p67 = scmp.ne.s32.totalorder %s58, %s59
      %p68 = scmp.eq.s32.totalorder %s27, 0
      %p69 = por %p67, %p68
      %p70 = scmp.ne.s32.totalorder %s58, %s59
      %p71 = scmp.eq.s32.totalorder %s28, 1
      %p72 = por %p70, %p71
      %p74 = scmp.ne.s32.totalorder %s59, %s73
      %p75 = scmp.eq.s32.totalorder %s28, 0
      %p76 = por %p74, %p75
      %s78 = sadd.s32 %s77, 1
      %p81 = scmp.eq.s32.totalorder %s22, 1
      %p82 = scmp.ne.s32.totalorder %s77, %s79
      %p83 = scmp.eq.s32.totalorder %s22, 0
      %p84 = por %p82, %p83
      %p85 = scmp.ne.s32.totalorder %s77, %s79
      %p86 = scmp.eq.s32.totalorder %s27, 1
      %p87 = por %p85, %p86
      %p88 = scmp.ne.s32.totalorder %s79, %s80
      %p89 = scmp.eq.s32.totalorder %s27, 0
      %p90 = por %p88, %p89
      %p91 = scmp.ne.s32.totalorder %s79, %s80
      %p92 = scmp.eq.s32.totalorder %s28, 1
      %p93 = por %p91, %p92
      %p95 = scmp.ne.s32.totalorder %s80, %s94
      %p96 = scmp.eq.s32.totalorder %s28, 0
      %p97 = por %p95, %p96
      %s99 = sadd.s32 %s98, 1
      %p102 = scmp.eq.s32.totalorder %s22, 1
      %p103 = scmp.ne.s32.totalorder %s98, %s100
      %p104 = scmp.eq.s32.totalorder %s22, 0
      %p105 = por %p103, %p104
      %p106 = scmp.ne.s32.totalorder %s98, %s100
      %p107 = scmp.eq.s32.totalorder %s27, 1
      %p108 = por %p106, %p107
      %p109 = scmp.ne.s32.totalorder %s100, %s101
      %p110 = scmp.eq.s32.totalorder %s27, 0
      %p111 = por %p109, %p110
      %p112 = scmp.ne.s32.totalorder %s100, %s101
      %p113 = scmp.eq.s32.totalorder %s28, 1
      %p114 = por %p112, %p113
      %p116 = scmp.ne.s32.totalorder %s101, %s115
      %p117 = scmp.eq.s32.totalorder %s28, 0
      %p118 = por %p116, %p117
      %s120 = sadd.s32 %s119, 1
      %p123 = scmp.eq.s32.totalorder %s22, 1
      %p124 = scmp.ne.s32.totalorder %s119, %s121
      %p125 = scmp.eq.s32.totalorder %s22, 0
      %p126 = por %p124, %p125
      %p127 = scmp.ne.s32.totalorder %s119, %s121
      %p128 = scmp.eq.s32.totalorder %s27, 1
      %p129 = por %p127, %p128
      %p130 = scmp.ne.s32.totalorder %s121, %s122
      %p131 = scmp.eq.s32.totalorder %s27, 0
      %p132 = por %p130, %p131
      %p133 = scmp.ne.s32.totalorder %s121, %s122
      %p134 = scmp.eq.s32.totalorder %s28, 1
      %p135 = por %p133, %p134
      %p137 = scmp.ne.s32.totalorder %s122, %s136
      %p138 = scmp.eq.s32.totalorder %s28, 0
      %p139 = por %p137, %p138
      %s141 = sadd.s32 %s140, 1
      %p144 = scmp.eq.s32.totalorder %s22, 1
      %p145 = scmp.ne.s32.totalorder %s140, %s142
      %p146 = scmp.eq.s32.totalorder %s22, 0
      %p147 = por %p145, %p146
      %p148 = scmp.ne.s32.totalorder %s140, %s142
      %p149 = scmp.eq.s32.totalorder %s27, 1
      %p150 = por %p148, %p149
      %p151 = scmp.ne.s32.totalorder %s142, %s143
      %p152 = scmp.eq.s32.totalorder %s27, 0
      %p153 = por %p151, %p152
      %p154 = scmp.ne.s32.totalorder %s142, %s143
      %p155 = scmp.eq.s32.totalorder %s28, 1
      %p156 = por %p154, %p155
      %p158 = scmp.ne.s32.totalorder %s143, %s157
      %p159 = scmp.eq.s32.totalorder %s28, 0
      %p160 = por %p158, %p159
      %s162 = sadd.s32 %s161, 1
      %p165 = scmp.eq.s32.totalorder %s22, 1
      %p166 = scmp.ne.s32.totalorder %s161, %s163
      %p167 = scmp.eq.s32.totalorder %s22, 0
      %p168 = por %p166, %p167
      %p169 = scmp.ne.s32.totalorder %s161, %s163
      %p170 = scmp.eq.s32.totalorder %s27, 1
      %p171 = por %p169, %p170
      %p172 = scmp.ne.s32.totalorder %s163, %s164
      %p173 = scmp.eq.s32.totalorder %s27, 0
      %p174 = por %p172, %p173
      %p175 = scmp.ne.s32.totalorder %s163, %s164
      %p176 = scmp.eq.s32.totalorder %s28, 1
      %p177 = por %p175, %p176
      %p179 = scmp.ne.s32.totalorder %s164, %s178
      %p180 = scmp.eq.s32.totalorder %s28, 0
      %p181 = por %p179, %p180
      %s182 = ssub.s32 %s22, %s29
      %p183 = scmp.eq.s32.totalorder %s182, 0
      %s185 = sadd.s32 %s184, 1
      %s186 = scalar_select %p183, %s184, %s185
      %p189 = pneg %p183
      %p190 = scmp.eq.s32.totalorder %s22, 1
      %p191 = por %p189, %p190
      %p192 = scmp.ne.s32.totalorder %s184, %s187
      %p193 = scmp.eq.s32.totalorder %s22, 0
      %p194 = por %p192, %p193
      %p195 = scmp.ne.s32.totalorder %s184, %s187
      %p196 = scmp.eq.s32.totalorder %s27, 1
      %p197 = por %p195, %p196
      %p198 = scmp.ne.s32.totalorder %s187, %s188
      %p199 = scmp.eq.s32.totalorder %s27, 0
      %p200 = por %p198, %p199
      %p201 = scmp.ne.s32.totalorder %s187, %s188
      %p202 = scmp.eq.s32.totalorder %s28, 1
      %p203 = por %p201, %p202
      %p205 = scmp.ne.s32.totalorder %s188, %s204
      %p206 = scmp.eq.s32.totalorder %s28, 0
      %p207 = por %p205, %p206
      %p208 = scmp.le.s32.totalorder 1, %s22
      %p209 = scmp.lt.s32.totalorder %s22, 3
      %p210 = pnand %p208, %p209
      %p211 = pneg %p210
      // Predicated region
      $region9: #{tpu_custom_call.1} parent=5 // pred_check
        _
      $region10: #{tpu_custom_call.1} parent=5 // pred_check_branch
        %213 = sbr.rel (%p210) target = $region12
      $region11: #{tpu_custom_call.1} parent=5 // pred_region
        %s214 = ssub.s32 %s22, 1
        // Predicated region
        $region13: #{tpu_custom_call.1} parent=11 // pred_check
          %p215 = pneg %p69
        $region14: #{tpu_custom_call.1} parent=11 // pred_check_branch
          %217 = sbr.rel (%p215) target = $region16
        $region15: #{tpu_custom_call.1} parent=11 // pred_region
          %s219 = ssub.s32 12288, 12288
          %220 = vsyncadd [#allocation8], %s219
          %s221 = sshll.u32 [#allocation7], 4
          %s222 = int_to_ptr.vmem [resolvable:$true] %s221
          %227 = dma.hbm_to_vmem [thread:$0]  %s1, 12288, %s222, [#allocation8], 128, 128, 8
        $region16: #{tpu_custom_call.1} parent=11 // pred_fallthru
          _
        // Predicated region
        $region17: #{tpu_custom_call.1} parent=11 // pred_check
          %p228 = pneg %p90
        $region18: #{tpu_custom_call.1} parent=11 // pred_check_branch
          %230 = sbr.rel (%p228) target = $region20
        $region19: #{tpu_custom_call.1} parent=11 // pred_region
          %s232 = ssub.s32 12288, 12288
          %233 = vsyncadd [#allocation8], %s232
          %s234 = sshll.u32 [#allocation9], 4
          %s235 = int_to_ptr.vmem [resolvable:$true] %s234
          %240 = dma.hbm_to_vmem [thread:$0]  %s2, 12288, %s235, [#allocation8], 128, 128, 8
        $region20: #{tpu_custom_call.1} parent=11 // pred_fallthru
          _
        // Predicated region
        $region21: #{tpu_custom_call.1} parent=11 // pred_check
          %p241 = pneg %p111
        $region22: #{tpu_custom_call.1} parent=11 // pred_check_branch
          %243 = sbr.rel (%p241) target = $region24
        $region23: #{tpu_custom_call.1} parent=11 // pred_region
          %s245 = ssub.s32 32, 32
          %246 = vsyncadd [#allocation11], %s245
          %s248 = sshll.u32 [#allocation10], 4
          %s249 = int_to_ptr.vmem [resolvable:$true] %s248
          %251 = dma.hbm_to_vmem [thread:$0]  %s3, 32, %s249, [#allocation11]
        $region24: #{tpu_custom_call.1} parent=11 // pred_fallthru
          _
        // Predicated region
        $region25: #{tpu_custom_call.1} parent=11 // pred_check
          %p252 = pneg %p132
        $region26: #{tpu_custom_call.1} parent=11 // pred_check_branch
          %254 = sbr.rel (%p252) target = $region28
        $region27: #{tpu_custom_call.1} parent=11 // pred_region
          %s256 = ssub.s32 32, 32
          %257 = vsyncadd [#allocation11], %s256
          %s259 = sshll.u32 [#allocation12], 4
          %s260 = int_to_ptr.vmem [resolvable:$true] %s259
          %262 = dma.hbm_to_vmem [thread:$0]  %s4, 32, %s260, [#allocation11]
        $region28: #{tpu_custom_call.1} parent=11 // pred_fallthru
          _
        // Predicated region
        $region29: #{tpu_custom_call.1} parent=11 // pred_check
          %p263 = pneg %p153
        $region30: #{tpu_custom_call.1} parent=11 // pred_check_branch
          %265 = sbr.rel (%p263) target = $region32
        $region31: #{tpu_custom_call.1} parent=11 // pred_region
          %s267 = ssub.s32 32, 32
          %268 = vsyncadd [#allocation14], %s267
          %s270 = sshll.u32 [#allocation13], 4
          %s271 = int_to_ptr.vmem [resolvable:$true] %s270
          %273 = dma.hbm_to_vmem [thread:$0]  %s5, 32, %s271, [#allocation14]
        $region32: #{tpu_custom_call.1} parent=11 // pred_fallthru
          _
        // Predicated region
        $region33: #{tpu_custom_call.1} parent=11 // pred_check
          %p274 = pneg %p174
        $region34: #{tpu_custom_call.1} parent=11 // pred_check_branch
          %276 = sbr.rel (%p274) target = $region36
        $region35: #{tpu_custom_call.1} parent=11 // pred_region
          %s278 = ssub.s32 32, 32
          %279 = vsyncadd [#allocation14], %s278
          %s281 = sshll.u32 [#allocation15], 4
          %s282 = int_to_ptr.vmem [resolvable:$true] %s281
          %284 = dma.hbm_to_vmem [thread:$0]  %s6, 32, %s282, [#allocation14]
        $region36: #{tpu_custom_call.1} parent=11 // pred_fallthru
          _
      $region12: #{tpu_custom_call.1} parent=5 // pred_fallthru
        _
      %p285 = scmp.lt.s32.totalorder %s22, 2
      // Predicated region
      $region37: #{tpu_custom_call.1} parent=5 // pred_check
        %p286 = pneg %p285
      $region38: #{tpu_custom_call.1} parent=5 // pred_check_branch
        %288 = sbr.rel (%p286) target = $region40
      $region39: #{tpu_custom_call.1} parent=5 // pred_region
        // Predicated region
        $region41: #{tpu_custom_call.1} parent=39 // pred_check
          %p289 = pneg %p42
        $region42: #{tpu_custom_call.1} parent=39 // pred_check_branch
          %291 = sbr.rel (%p289) target = $region44
        $region43: #{tpu_custom_call.1} parent=39 // pred_region
          %s292 = sand.u32 %s32, 1
          %s293 = scalar_lea.sflag [#allocation5], %s292
          %s294 = sand.u32 %s32, 1
          %s295 = smul.addr %s294, 16
          %s296 = scalar_lea.vmem [#allocation4], %s295
          %s298 = ssub.s32 256, 256
          %299 = vsyncadd %s293, %s298
          %s300 = smul.addr %s22, 2
          %s301 = smul.addr %s300, 128
          %s302 = scalar_lea.hbm %s0, %s301
          %s304 = sshll.u32 %s296, 4
          %s305 = int_to_ptr.vmem [resolvable:$true] %s304
          %307 = dma.hbm_to_vmem [thread:$0]  %s302, 256, %s305, %s293
        $region44: #{tpu_custom_call.1} parent=39 // pred_fallthru
          _
      $region40: #{tpu_custom_call.1} parent=5 // pred_fallthru
        _
      %p308 = scmp.le.s32.totalorder 1, %s22
      %p309 = scmp.lt.s32.totalorder %s22, 3
      %p310 = pnand %p308, %p309
      %p311 = pneg %p310
      // Predicated region
      $region45: #{tpu_custom_call.1} parent=5 // pred_check
        _
      $region46: #{tpu_custom_call.1} parent=5 // pred_check_branch
        %313 = sbr.rel (%p310) target = $region48
      $region47: #{tpu_custom_call.1} parent=5 // pred_region
        %s314 = ssub.s32 %s22, 1
        %s315 = sand.u32 %s35, 1
        %s316 = scalar_lea.sflag [#allocation5], %s315
        %s317 = sand.u32 %s35, 1
        %s318 = smul.addr %s317, 16
        %s319 = scalar_lea.vmem [#allocation4], %s318
        // Predicated region
        $region49: #{tpu_custom_call.1} parent=47 // pred_check
          %p320 = pneg %p48
        $region50: #{tpu_custom_call.1} parent=47 // pred_check_branch
          %322 = sbr.rel (%p320) target = $region52
        $region51: #{tpu_custom_call.1} parent=47 // pred_region
          %323 = dma.done %s316, 256
        $region52: #{tpu_custom_call.1} parent=47 // pred_fallthru
          _
        // Predicated region
        $region53: #{tpu_custom_call.1} parent=47 // pred_check
          %p324 = pneg %p69
        $region54: #{tpu_custom_call.1} parent=47 // pred_check_branch
          %326 = sbr.rel (%p324) target = $region56
        $region55: #{tpu_custom_call.1} parent=47 // pred_region
          %327 = dma.done [#allocation8], 12288
        $region56: #{tpu_custom_call.1} parent=47 // pred_fallthru
          _
        // Predicated region
        $region57: #{tpu_custom_call.1} parent=47 // pred_check
          %p328 = pneg %p90
        $region58: #{tpu_custom_call.1} parent=47 // pred_check_branch
          %330 = sbr.rel (%p328) target = $region60
        $region59: #{tpu_custom_call.1} parent=47 // pred_region
          %331 = dma.done [#allocation8], 12288
        $region60: #{tpu_custom_call.1} parent=47 // pred_fallthru
          _
        // Predicated region
        $region61: #{tpu_custom_call.1} parent=47 // pred_check
          %p332 = pneg %p111
        $region62: #{tpu_custom_call.1} parent=47 // pred_check_branch
          %334 = sbr.rel (%p332) target = $region64
        $region63: #{tpu_custom_call.1} parent=47 // pred_region
          %335 = dma.done [#allocation11], 32
        $region64: #{tpu_custom_call.1} parent=47 // pred_fallthru
          _
        // Predicated region
        $region65: #{tpu_custom_call.1} parent=47 // pred_check
          %p336 = pneg %p132
        $region66: #{tpu_custom_call.1} parent=47 // pred_check_branch
          %338 = sbr.rel (%p336) target = $region68
        $region67: #{tpu_custom_call.1} parent=47 // pred_region
          %339 = dma.done [#allocation11], 32
        $region68: #{tpu_custom_call.1} parent=47 // pred_fallthru
          _
        // Predicated region
        $region69: #{tpu_custom_call.1} parent=47 // pred_check
          %p340 = pneg %p153
        $region70: #{tpu_custom_call.1} parent=47 // pred_check_branch
          %342 = sbr.rel (%p340) target = $region72
        $region71: #{tpu_custom_call.1} parent=47 // pred_region
          %343 = dma.done [#allocation14], 32
        $region72: #{tpu_custom_call.1} parent=47 // pred_fallthru
          _
        // Predicated region
        $region73: #{tpu_custom_call.1} parent=47 // pred_check
          %p344 = pneg %p174
        $region74: #{tpu_custom_call.1} parent=47 // pred_check_branch
          %346 = sbr.rel (%p344) target = $region76
        $region75: #{tpu_custom_call.1} parent=47 // pred_region
          %347 = dma.done [#allocation14], 32
        $region76: #{tpu_custom_call.1} parent=47 // pred_fallthru
          _
        %s348 = sand.u32 %s35, 1
        %s349 = scalar_lea.sflag [#allocation5], %s348
        %s350 = sand.u32 %s35, 1
        %s351 = smul.addr %s350, 16
        %s352 = scalar_lea.vmem [#allocation4], %s351
        %p353 = pneg %p48
        %p354 = pneg %p45
        %p355 = pneg %p69
        %p356 = pneg %p66
        %p357 = pneg %p90
        %p358 = pneg %p87
        %p359 = pneg %p111
        %p360 = pneg %p108
        %p361 = pneg %p132
        %p362 = pneg %p129
        %p363 = pneg %p153
        %p364 = pneg %p150
        %p365 = pneg %p174
        %p366 = pneg %p171
        %p367 = pneg %p200
        %p368 = pneg %p197
        %s369 = sand.u32 %s187, 1
        %s370 = scalar_lea.sflag [#allocation6], %s369
        %s371 = sand.u32 %s187, 1
        %s372 = smul.addr %s371, 16
        %s373 = scalar_lea.vmem [#allocation16], %s372
        %vm375 = vcmask 1040384
        %vm376 = vsmask.f32 256
        %vm377 = vmand %vm375, %vm376
        %vm378 = vcmask 1044484
        %vm379 = vsmask.f32 4352
        %vm380 = vmand %vm378, %vm379
        %vm381 = vmor %vm380, %vm377
        %v382 = vld [vmem:[#allocation2] sm:$0x11]
        %v383 = vsel %vm381, 0, %v382
        %384 = vst [vmem:[#allocation2] sm:$0x11] %v383
        %vm385 = vsmask.f32 7938
        %vm386 = vmand %vm375, %vm385
        %vm387 = vsmask.f32 7954
        %vm388 = vmand %vm378, %vm387
        %vm389 = vmor %vm388, %vm386
        %v390 = vld [vmem:[#allocation2 + $0x8] sm:$0x11]
        %v391 = vsel %vm389, 0, %v390
        %392 = vst [vmem:[#allocation2 + $0x8] sm:$0x11] %v391
        %v393 = vld [vmem:[%s319] sm:$0xff]
        %v394 = vld [vmem:[%s319 + $0x8] sm:$0xff]
        %v395 = vpack.c.bf16 %v393, %v393
        %v396 = vpack.c.bf16 %v394, %v394
        %v399 = vunpack.c.l.b16 %v395
        %v400 = vunpack.c.l.b16 %v396
        %v401 = vpack.c.b16 %v400, %v399
        %v403 = vshrl.u32 %v401, 16
        %v405 = vrot.slane %v403, 7
        %v406 = vshll.u32 %v401, 16
        %v408 = vor.u32 %v405, %v406
        %v409 = vrot.slane %v405, 4
        %vm412 = vcmask 1043456
        %vm413 = vmand %vm412, %vm385
        %vm414 = vcmask 1047556
        %vm415 = vmand %vm414, %vm387
        %vm416 = vmor %vm415, %vm413
        %v417 = vld [vmem:[#allocation2] sm:$0xff]
        %v418 = vsel %vm416, %v408, %v417
        %419 = vst [vmem:[#allocation2] sm:$0xff] %v418
        %v420 = vld [vmem:[#allocation2 + $0x8] sm:$0x11]
        %v421 = vsel %vm381, %v409, %v420
        %422 = vst [vmem:[#allocation2 + $0x8] sm:$0x11] %v421
        %v423 = vld [vmem:[#allocation2] sm:$0xff]
        %v424 = vld [vmem:[#allocation7] sm:$0xff]
        %v425 = vld [vmem:[#allocation7 + $0x8] sm:$0xff]
        %v426 = vld [vmem:[#allocation7 + $0x10] sm:$0xff]
        %v427 = vld [vmem:[#allocation7 + $0x18] sm:$0xff]
        %v428 = vld [vmem:[#allocation7 + $0x20] sm:$0xff]
        %v429 = vld [vmem:[#allocation7 + $0x28] sm:$0xff]
        %v430 = vld [vmem:[#allocation7 + $0x30] sm:$0xff]
        %v431 = vld [vmem:[#allocation7 + $0x38] sm:$0xff]
        %v432 = vld [vmem:[#allocation7 + $0x40] sm:$0xff]
        %v433 = vld [vmem:[#allocation7 + $0x48] sm:$0xff]
        %v434 = vld [vmem:[#allocation7 + $0x50] sm:$0xff]
        %v435 = vld [vmem:[#allocation7 + $0x58] sm:$0xff]
        %v436 = vld [vmem:[#allocation7 + $0x60] sm:$0xff]
        %v437 = vld [vmem:[#allocation7 + $0x68] sm:$0xff]
        %v438 = vld [vmem:[#allocation7 + $0x70] sm:$0xff]
        %v439 = vld [vmem:[#allocation7 + $0x78] sm:$0xff]
        %v440 = vld [vmem:[#allocation7 + $0x80] sm:$0xff]
        %v441 = vld [vmem:[#allocation7 + $0x88] sm:$0xff]
        %v442 = vld [vmem:[#allocation7 + $0x90] sm:$0xff]
        %v443 = vld [vmem:[#allocation7 + $0x98] sm:$0xff]
        %v444 = vld [vmem:[#allocation7 + $0xa0] sm:$0xff]
        %v445 = vld [vmem:[#allocation7 + $0xa8] sm:$0xff]
        %v446 = vld [vmem:[#allocation7 + $0xb0] sm:$0xff]
        %v447 = vld [vmem:[#allocation7 + $0xb8] sm:$0xff]
        %v448 = vld [vmem:[#allocation7 + $0xc0] sm:$0xff]
        %v449 = vld [vmem:[#allocation7 + $0xc8] sm:$0xff]
        %v450 = vld [vmem:[#allocation7 + $0xd0] sm:$0xff]
        %v451 = vld [vmem:[#allocation7 + $0xd8] sm:$0xff]
        %v452 = vld [vmem:[#allocation7 + $0xe0] sm:$0xff]
        %v453 = vld [vmem:[#allocation7 + $0xe8] sm:$0xff]
        %v454 = vld [vmem:[#allocation7 + $0xf0] sm:$0xff]
        %v455 = vld [vmem:[#allocation7 + $0xf8] sm:$0xff]
        %v456 = vld [vmem:[#allocation2 + $0x8] sm:$0x11]
        %s457 = scalar_lea.vmem [#allocation7], 256
        %v458 = vld [vmem:[%s457] sm:$0xff]
        %v459 = vld [vmem:[%s457 + $0x8] sm:$0xff]
        %v460 = vld [vmem:[%s457 + $0x10] sm:$0xff]
        %v461 = vld [vmem:[%s457 + $0x18] sm:$0xff]
        %v462 = vld [vmem:[%s457 + $0x20] sm:$0xff]
        %v463 = vld [vmem:[%s457 + $0x28] sm:$0xff]
        %v464 = vld [vmem:[%s457 + $0x30] sm:$0xff]
        %v465 = vld [vmem:[%s457 + $0x38] sm:$0xff]
        %v466 = vld [vmem:[%s457 + $0x40] sm:$0xff]
        %v467 = vld [vmem:[%s457 + $0x48] sm:$0xff]
        %v468 = vld [vmem:[%s457 + $0x50] sm:$0xff]
        %v469 = vld [vmem:[%s457 + $0x58] sm:$0xff]
        %v470 = vld [vmem:[%s457 + $0x60] sm:$0xff]
        %v471 = vld [vmem:[%s457 + $0x68] sm:$0xff]
        %v472 = vld [vmem:[%s457 + $0x70] sm:$0xff]
        %v473 = vld [vmem:[%s457 + $0x78] sm:$0xff]
        %v474 = vld [vmem:[%s457 + $0x80] sm:$0xff]
        %v475 = vld [vmem:[%s457 + $0x88] sm:$0xff]
        %v476 = vld [vmem:[%s457 + $0x90] sm:$0xff]
        %v477 = vld [vmem:[%s457 + $0x98] sm:$0xff]
        %v478 = vld [vmem:[%s457 + $0xa0] sm:$0xff]
        %v479 = vld [vmem:[%s457 + $0xa8] sm:$0xff]
        %v480 = vld [vmem:[%s457 + $0xb0] sm:$0xff]
        %v481 = vld [vmem:[%s457 + $0xb8] sm:$0xff]
        %v482 = vld [vmem:[%s457 + $0xc0] sm:$0xff]
        %v483 = vld [vmem:[%s457 + $0xc8] sm:$0xff]
        %v484 = vld [vmem:[%s457 + $0xd0] sm:$0xff]
        %v485 = vld [vmem:[%s457 + $0xd8] sm:$0xff]
        %v486 = vld [vmem:[%s457 + $0xe0] sm:$0xff]
        %v487 = vld [vmem:[%s457 + $0xe8] sm:$0xff]
        %v488 = vld [vmem:[%s457 + $0xf0] sm:$0xff]
        %v489 = vld [vmem:[%s457 + $0xf8] sm:$0xff]
        %v492 = vunpack.c.l.b16 %v423
        %v493 = vunpack.c.h.b16 %v423
        %v494 = vunpack.c.l.b16 %v456
        %v495 = vunpack.c.h.b16 %v456
        %v496 = vpack.c.b16 %v494, %v492
        %v497 = vpack.c.b16 %v495, %v493
        %v499 = vshrl.u32 %v496, 16
        %v501 = vshll.u32 %v496, 16
        %v503 = vrot.slane %v501, 1
        %v504 = vor.u32 %v499, %v503
        %v506 = vshrl.u32 %v497, 16
        %v508 = vshll.u32 %v497, 16
        %v510 = vrot.slane %v508, 1
        %v511 = vor.u32 %v506, %v510
        %v546 = vunpack.c.l.b16 %v458
        %v547 = vunpack.c.h.b16 %v458
        %v548 = vunpack.c.l.b16 %v459
        %v549 = vunpack.c.h.b16 %v459
        %v550 = vunpack.c.l.b16 %v460
        %v551 = vunpack.c.h.b16 %v460
        %v552 = vunpack.c.l.b16 %v461
        %v553 = vunpack.c.h.b16 %v461
        %v554 = vunpack.c.l.b16 %v462
        %v555 = vunpack.c.h.b16 %v462
        %v556 = vunpack.c.l.b16 %v463
        %v557 = vunpack.c.h.b16 %v463
        %v558 = vunpack.c.l.b16 %v464
        %v559 = vunpack.c.h.b16 %v464
        %v560 = vunpack.c.l.b16 %v465
        %v561 = vunpack.c.h.b16 %v465
        %v562 = vunpack.c.l.b16 %v466
        %v563 = vunpack.c.h.b16 %v466
        %v564 = vunpack.c.l.b16 %v467
        %v565 = vunpack.c.h.b16 %v467
        %v566 = vunpack.c.l.b16 %v468
        %v567 = vunpack.c.h.b16 %v468
        %v568 = vunpack.c.l.b16 %v469
        %v569 = vunpack.c.h.b16 %v469
        %v570 = vunpack.c.l.b16 %v470
        %v571 = vunpack.c.h.b16 %v470
        %v572 = vunpack.c.l.b16 %v471
        %v573 = vunpack.c.h.b16 %v471
        %v574 = vunpack.c.l.b16 %v472
        %v575 = vunpack.c.h.b16 %v472
        %v576 = vunpack.c.l.b16 %v473
        %v577 = vunpack.c.h.b16 %v473
        %v578 = vunpack.c.l.b16 %v474
        %v579 = vunpack.c.h.b16 %v474
        %v580 = vunpack.c.l.b16 %v475
        %v581 = vunpack.c.h.b16 %v475
        %v582 = vunpack.c.l.b16 %v476
        %v583 = vunpack.c.h.b16 %v476
        %v584 = vunpack.c.l.b16 %v477
        %v585 = vunpack.c.h.b16 %v477
        %v586 = vunpack.c.l.b16 %v478
        %v587 = vunpack.c.h.b16 %v478
        %v588 = vunpack.c.l.b16 %v479
        %v589 = vunpack.c.h.b16 %v479
        %v590 = vunpack.c.l.b16 %v480
        %v591 = vunpack.c.h.b16 %v480
        %v592 = vunpack.c.l.b16 %v481
        %v593 = vunpack.c.h.b16 %v481
        %v594 = vunpack.c.l.b16 %v482
        %v595 = vunpack.c.h.b16 %v482
        %v596 = vunpack.c.l.b16 %v483
        %v597 = vunpack.c.h.b16 %v483
        %v598 = vunpack.c.l.b16 %v484
        %v599 = vunpack.c.h.b16 %v484
        %v600 = vunpack.c.l.b16 %v485
        %v601 = vunpack.c.h.b16 %v485
        %v602 = vunpack.c.l.b16 %v486
        %v603 = vunpack.c.h.b16 %v486
        %v604 = vunpack.c.l.b16 %v487
        %v605 = vunpack.c.h.b16 %v487
        %v606 = vunpack.c.l.b16 %v488
        %v607 = vunpack.c.h.b16 %v488
        %v608 = vunpack.c.l.b16 %v489
        %v609 = vunpack.c.h.b16 %v489
        %v610 = vpack.c.b16 %v548, %v546
        %v611 = vpack.c.b16 %v549, %v547
        %v612 = vpack.c.b16 %v552, %v550
        %v613 = vpack.c.b16 %v553, %v551
        %v614 = vpack.c.b16 %v556, %v554
        %v615 = vpack.c.b16 %v557, %v555
        %v616 = vpack.c.b16 %v560, %v558
        %v617 = vpack.c.b16 %v561, %v559
        %v618 = vpack.c.b16 %v564, %v562
        %v619 = vpack.c.b16 %v565, %v563
        %v620 = vpack.c.b16 %v568, %v566
        %v621 = vpack.c.b16 %v569, %v567
        %v622 = vpack.c.b16 %v572, %v570
        %v623 = vpack.c.b16 %v573, %v571
        %v624 = vpack.c.b16 %v576, %v574
        %v625 = vpack.c.b16 %v577, %v575
        %v626 = vpack.c.b16 %v580, %v578
        %v627 = vpack.c.b16 %v581, %v579
        %v628 = vpack.c.b16 %v584, %v582
        %v629 = vpack.c.b16 %v585, %v583
        %v630 = vpack.c.b16 %v588, %v586
        %v631 = vpack.c.b16 %v589, %v587
        %v632 = vpack.c.b16 %v592, %v590
        %v633 = vpack.c.b16 %v593, %v591
        %v634 = vpack.c.b16 %v596, %v594
        %v635 = vpack.c.b16 %v597, %v595
        %v636 = vpack.c.b16 %v600, %v598
        %v637 = vpack.c.b16 %v601, %v599
        %v638 = vpack.c.b16 %v604, %v602
        %v639 = vpack.c.b16 %v605, %v603
        %v640 = vpack.c.b16 %v608, %v606
        %v641 = vpack.c.b16 %v609, %v607
        %674 = vmatprep.subr.bf16.mxu0 %v611
        %675 = vmatpush1.bf16.msra.mxu0 %v610
        %676 = vmatprep.subr.bf16.mxu0 %v613
        %677 = vmatpush1.bf16.msra.mxu0 %v612
        %678 = vmatprep.subr.bf16.mxu0 %v615
        %679 = vmatpush1.bf16.msra.mxu0 %v614
        %680 = vmatprep.subr.bf16.mxu0 %v617
        %681 = vmatpush1.bf16.msra.mxu0 %v616
        %682 = vmatprep.subr.bf16.mxu0 %v619
        %683 = vmatpush1.bf16.msra.mxu0 %v618
        %684 = vmatprep.subr.bf16.mxu0 %v621
        %685 = vmatpush1.bf16.msra.mxu0 %v620
        %686 = vmatprep.subr.bf16.mxu0 %v623
        %687 = vmatpush1.bf16.msra.mxu0 %v622
        %688 = vmatprep.subr.bf16.mxu0 %v625
        %689 = vmatpush1.bf16.msra.mxu0 %v624
        %690 = vmatprep.subr.bf16.mxu0 %v627
        %691 = vmatpush1.bf16.msra.mxu0 %v626
        %692 = vmatprep.subr.bf16.mxu0 %v629
        %693 = vmatpush1.bf16.msra.mxu0 %v628
        %694 = vmatprep.subr.bf16.mxu0 %v631
        %695 = vmatpush1.bf16.msra.mxu0 %v630
        %696 = vmatprep.subr.bf16.mxu0 %v633
        %697 = vmatpush1.bf16.msra.mxu0 %v632
        %698 = vmatprep.subr.bf16.mxu0 %v635
        %699 = vmatpush1.bf16.msra.mxu0 %v634
        %700 = vmatprep.subr.bf16.mxu0 %v637
        %701 = vmatpush1.bf16.msra.mxu0 %v636
        %702 = vmatprep.subr.bf16.mxu0 %v639
        %703 = vmatpush1.bf16.msra.mxu0 %v638
        %704 = vmatprep.subr.bf16.mxu0 %v641
        %705 = vmatpush1.bf16.msra.mxu0 %v640
        %706 = vmatprep.mubr.bf16.mxu0 %v511
        %707 = vmatmul.mubr.bf16.gmra.mrb[0].mxu0 %v504
        %v708 = vpop.f32.mrb[0].mxu0
        %v709 = vadd.f32 0.0, %v708
        %v710 = vpop.f32.mrb[0].mxu0
        %v711 = vadd.f32 0.0, %v710
        %v712 = vpop.f32.mrb[0].mxu0
        %v713 = vpop.f32.mrb[0].mxu0
        %714 = vdwg.mxu0
        %v715 = vpack.c.b16 %v492, %v492
        %v716 = vpack.c.b16 %v493, %v493
        %v751 = vunpack.c.l.b16 %v424
        %v752 = vunpack.c.h.b16 %v424
        %v753 = vunpack.c.l.b16 %v425
        %v754 = vunpack.c.h.b16 %v425
        %v755 = vunpack.c.l.b16 %v426
        %v756 = vunpack.c.h.b16 %v426
        %v757 = vunpack.c.l.b16 %v427
        %v758 = vunpack.c.h.b16 %v427
        %v759 = vunpack.c.l.b16 %v428
        %v760 = vunpack.c.h.b16 %v428
        %v761 = vunpack.c.l.b16 %v429
        %v762 = vunpack.c.h.b16 %v429
        %v763 = vunpack.c.l.b16 %v430
        %v764 = vunpack.c.h.b16 %v430
        %v765 = vunpack.c.l.b16 %v431
        %v766 = vunpack.c.h.b16 %v431
        %v767 = vunpack.c.l.b16 %v432
        %v768 = vunpack.c.h.b16 %v432
        %v769 = vunpack.c.l.b16 %v433
        %v770 = vunpack.c.h.b16 %v433
        %v771 = vunpack.c.l.b16 %v434
        %v772 = vunpack.c.h.b16 %v434
        %v773 = vunpack.c.l.b16 %v435
        %v774 = vunpack.c.h.b16 %v435
        %v775 = vunpack.c.l.b16 %v436
        %v776 = vunpack.c.h.b16 %v436
        %v777 = vunpack.c.l.b16 %v437
        %v778 = vunpack.c.h.b16 %v437
        %v779 = vunpack.c.l.b16 %v438
        %v780 = vunpack.c.h.b16 %v438
        %v781 = vunpack.c.l.b16 %v439
        %v782 = vunpack.c.h.b16 %v439
        %v783 = vunpack.c.l.b16 %v440
        %v784 = vunpack.c.h.b16 %v440
        %v785 = vunpack.c.l.b16 %v441
        %v786 = vunpack.c.h.b16 %v441
        %v787 = vunpack.c.l.b16 %v442
        %v788 = vunpack.c.h.b16 %v442
        %v789 = vunpack.c.l.b16 %v443
        %v790 = vunpack.c.h.b16 %v443
        %v791 = vunpack.c.l.b16 %v444
        %v792 = vunpack.c.h.b16 %v444
        %v793 = vunpack.c.l.b16 %v445
        %v794 = vunpack.c.h.b16 %v445
        %v795 = vunpack.c.l.b16 %v446
        %v796 = vunpack.c.h.b16 %v446
        %v797 = vunpack.c.l.b16 %v447
        %v798 = vunpack.c.h.b16 %v447
        %v799 = vunpack.c.l.b16 %v448
        %v800 = vunpack.c.h.b16 %v448
        %v801 = vunpack.c.l.b16 %v449
        %v802 = vunpack.c.h.b16 %v449
        %v803 = vunpack.c.l.b16 %v450
        %v804 = vunpack.c.h.b16 %v450
        %v805 = vunpack.c.l.b16 %v451
        %v806 = vunpack.c.h.b16 %v451
        %v807 = vunpack.c.l.b16 %v452
        %v808 = vunpack.c.h.b16 %v452
        %v809 = vunpack.c.l.b16 %v453
        %v810 = vunpack.c.h.b16 %v453
        %v811 = vunpack.c.l.b16 %v454
        %v812 = vunpack.c.h.b16 %v454
        %v813 = vunpack.c.l.b16 %v455
        %v814 = vunpack.c.h.b16 %v455
        %v815 = vpack.c.b16 %v753, %v751
        %v816 = vpack.c.b16 %v754, %v752
        %v817 = vpack.c.b16 %v757, %v755
        %v818 = vpack.c.b16 %v758, %v756
        %v819 = vpack.c.b16 %v761, %v759
        %v820 = vpack.c.b16 %v762, %v760
        %v821 = vpack.c.b16 %v765, %v763
        %v822 = vpack.c.b16 %v766, %v764
        %v823 = vpack.c.b16 %v769, %v767
        %v824 = vpack.c.b16 %v770, %v768
        %v825 = vpack.c.b16 %v773, %v771
        %v826 = vpack.c.b16 %v774, %v772
        %v827 = vpack.c.b16 %v777, %v775
        %v828 = vpack.c.b16 %v778, %v776
        %v829 = vpack.c.b16 %v781, %v779
        %v830 = vpack.c.b16 %v782, %v780
        %v831 = vpack.c.b16 %v785, %v783
        %v832 = vpack.c.b16 %v786, %v784
        %v833 = vpack.c.b16 %v789, %v787
        %v834 = vpack.c.b16 %v790, %v788
        %v835 = vpack.c.b16 %v793, %v791
        %v836 = vpack.c.b16 %v794, %v792
        %v837 = vpack.c.b16 %v797, %v795
        %v838 = vpack.c.b16 %v798, %v796
        %v839 = vpack.c.b16 %v801, %v799
        %v840 = vpack.c.b16 %v802, %v800
        %v841 = vpack.c.b16 %v805, %v803
        %v842 = vpack.c.b16 %v806, %v804
        %v843 = vpack.c.b16 %v809, %v807
        %v844 = vpack.c.b16 %v810, %v808
        %v845 = vpack.c.b16 %v813, %v811
        %v846 = vpack.c.b16 %v814, %v812
        %879 = vmatprep.subr.bf16.mxu0 %v816
        %880 = vmatpush1.bf16.msra.mxu0 %v815
        %881 = vmatprep.subr.bf16.mxu0 %v818
        %882 = vmatpush1.bf16.msra.mxu0 %v817
        %883 = vmatprep.subr.bf16.mxu0 %v820
        %884 = vmatpush1.bf16.msra.mxu0 %v819
        %885 = vmatprep.subr.bf16.mxu0 %v822
        %886 = vmatpush1.bf16.msra.mxu0 %v821
        %887 = vmatprep.subr.bf16.mxu0 %v824
        %888 = vmatpush1.bf16.msra.mxu0 %v823
        %889 = vmatprep.subr.bf16.mxu0 %v826
        %890 = vmatpush1.bf16.msra.mxu0 %v825
        %891 = vmatprep.subr.bf16.mxu0 %v828
        %892 = vmatpush1.bf16.msra.mxu0 %v827
        %893 = vmatprep.subr.bf16.mxu0 %v830
        %894 = vmatpush1.bf16.msra.mxu0 %v829
        %895 = vmatprep.subr.bf16.mxu0 %v832
        %896 = vmatpush1.bf16.msra.mxu0 %v831
        %897 = vmatprep.subr.bf16.mxu0 %v834
        %898 = vmatpush1.bf16.msra.mxu0 %v833
        %899 = vmatprep.subr.bf16.mxu0 %v836
        %900 = vmatpush1.bf16.msra.mxu0 %v835
        %901 = vmatprep.subr.bf16.mxu0 %v838
        %902 = vmatpush1.bf16.msra.mxu0 %v837
        %903 = vmatprep.subr.bf16.mxu0 %v840
        %904 = vmatpush1.bf16.msra.mxu0 %v839
        %905 = vmatprep.subr.bf16.mxu0 %v842
        %906 = vmatpush1.bf16.msra.mxu0 %v841
        %907 = vmatprep.subr.bf16.mxu0 %v844
        %908 = vmatpush1.bf16.msra.mxu0 %v843
        %909 = vmatprep.subr.bf16.mxu0 %v846
        %910 = vmatpush1.bf16.msra.mxu0 %v845
        %911 = vmatprep.mubr.bf16.mxu0 %v716
        %912 = vmatmul.mubr.bf16.gmra.mrb[0].mxu0 %v715
        %v913 = vpop.f32.mrb[0].mxu0
        %v914 = vadd.f32 %v709, %v913
        %v915 = vpop.f32.mrb[0].mxu0
        %v916 = vadd.f32 %v711, %v915
        %v917 = vpop.f32.mrb[0].mxu0
        %v918 = vpop.f32.mrb[0].mxu0
        %919 = vdwg.mxu0
        %v920 = vld [vmem:[#allocation2] sm:$0xee]
        %s921 = scalar_lea.vmem [#allocation7], 512
        %v922 = vld [vmem:[%s921] sm:$0xff]
        %v923 = vld [vmem:[%s921 + $0x8] sm:$0xff]
        %v924 = vld [vmem:[%s921 + $0x10] sm:$0xff]
        %v925 = vld [vmem:[%s921 + $0x18] sm:$0xff]
        %v926 = vld [vmem:[%s921 + $0x20] sm:$0xff]
        %v927 = vld [vmem:[%s921 + $0x28] sm:$0xff]
        %v928 = vld [vmem:[%s921 + $0x30] sm:$0xff]
        %v929 = vld [vmem:[%s921 + $0x38] sm:$0xff]
        %v930 = vld [vmem:[%s921 + $0x40] sm:$0xff]
        %v931 = vld [vmem:[%s921 + $0x48] sm:$0xff]
        %v932 = vld [vmem:[%s921 + $0x50] sm:$0xff]
        %v933 = vld [vmem:[%s921 + $0x58] sm:$0xff]
        %v934 = vld [vmem:[%s921 + $0x60] sm:$0xff]
        %v935 = vld [vmem:[%s921 + $0x68] sm:$0xff]
        %v936 = vld [vmem:[%s921 + $0x70] sm:$0xff]
        %v937 = vld [vmem:[%s921 + $0x78] sm:$0xff]
        %v938 = vld [vmem:[%s921 + $0x80] sm:$0xff]
        %v939 = vld [vmem:[%s921 + $0x88] sm:$0xff]
        %v940 = vld [vmem:[%s921 + $0x90] sm:$0xff]
        %v941 = vld [vmem:[%s921 + $0x98] sm:$0xff]
        %v942 = vld [vmem:[%s921 + $0xa0] sm:$0xff]
        %v943 = vld [vmem:[%s921 + $0xa8] sm:$0xff]
        %v944 = vld [vmem:[%s921 + $0xb0] sm:$0xff]
        %v945 = vld [vmem:[%s921 + $0xb8] sm:$0xff]
        %v946 = vld [vmem:[%s921 + $0xc0] sm:$0xff]
        %v947 = vld [vmem:[%s921 + $0xc8] sm:$0xff]
        %v948 = vld [vmem:[%s921 + $0xd0] sm:$0xff]
        %v949 = vld [vmem:[%s921 + $0xd8] sm:$0xff]
        %v950 = vld [vmem:[%s921 + $0xe0] sm:$0xff]
        %v951 = vld [vmem:[%s921 + $0xe8] sm:$0xff]
        %v952 = vld [vmem:[%s921 + $0xf0] sm:$0xff]
        %v953 = vld [vmem:[%s921 + $0xf8] sm:$0xff]
        %v955 = vunpack.c.l.b16 %v920
        %v956 = vunpack.c.h.b16 %v920
        %v957 = vpack.c.b16 %v494, %v955
        %v958 = vpack.c.b16 %v495, %v956
        %v959 = vrot.slane %v957, 1
        %v960 = vrot.slane %v958, 1
        %v995 = vunpack.c.l.b16 %v922
        %v996 = vunpack.c.h.b16 %v922
        %v997 = vunpack.c.l.b16 %v923
        %v998 = vunpack.c.h.b16 %v923
        %v999 = vunpack.c.l.b16 %v924
        %v1000 = vunpack.c.h.b16 %v924
        %v1001 = vunpack.c.l.b16 %v925
        %v1002 = vunpack.c.h.b16 %v925
        %v1003 = vunpack.c.l.b16 %v926
        %v1004 = vunpack.c.h.b16 %v926
        %v1005 = vunpack.c.l.b16 %v927
        %v1006 = vunpack.c.h.b16 %v927
        %v1007 = vunpack.c.l.b16 %v928
        %v1008 = vunpack.c.h.b16 %v928
        %v1009 = vunpack.c.l.b16 %v929
        %v1010 = vunpack.c.h.b16 %v929
        %v1011 = vunpack.c.l.b16 %v930
        %v1012 = vunpack.c.h.b16 %v930
        %v1013 = vunpack.c.l.b16 %v931
        %v1014 = vunpack.c.h.b16 %v931
        %v1015 = vunpack.c.l.b16 %v932
        %v1016 = vunpack.c.h.b16 %v932
        %v1017 = vunpack.c.l.b16 %v933
        %v1018 = vunpack.c.h.b16 %v933
        %v1019 = vunpack.c.l.b16 %v934
        %v1020 = vunpack.c.h.b16 %v934
        %v1021 = vunpack.c.l.b16 %v935
        %v1022 = vunpack.c.h.b16 %v935
        %v1023 = vunpack.c.l.b16 %v936
        %v1024 = vunpack.c.h.b16 %v936
        %v1025 = vunpack.c.l.b16 %v937
        %v1026 = vunpack.c.h.b16 %v937
        %v1027 = vunpack.c.l.b16 %v938
        %v1028 = vunpack.c.h.b16 %v938
        %v1029 = vunpack.c.l.b16 %v939
        %v1030 = vunpack.c.h.b16 %v939
        %v1031 = vunpack.c.l.b16 %v940
        %v1032 = vunpack.c.h.b16 %v940
        %v1033 = vunpack.c.l.b16 %v941
        %v1034 = vunpack.c.h.b16 %v941
        %v1035 = vunpack.c.l.b16 %v942
        %v1036 = vunpack.c.h.b16 %v942
        %v1037 = vunpack.c.l.b16 %v943
        %v1038 = vunpack.c.h.b16 %v943
        %v1039 = vunpack.c.l.b16 %v944
        %v1040 = vunpack.c.h.b16 %v944
        %v1041 = vunpack.c.l.b16 %v945
        %v1042 = vunpack.c.h.b16 %v945
        %v1043 = vunpack.c.l.b16 %v946
        %v1044 = vunpack.c.h.b16 %v946
        %v1045 = vunpack.c.l.b16 %v947
        %v1046 = vunpack.c.h.b16 %v947
        %v1047 = vunpack.c.l.b16 %v948
        %v1048 = vunpack.c.h.b16 %v948
        %v1049 = vunpack.c.l.b16 %v949
        %v1050 = vunpack.c.h.b16 %v949
        %v1051 = vunpack.c.l.b16 %v950
        %v1052 = vunpack.c.h.b16 %v950
        %v1053 = vunpack.c.l.b16 %v951
        %v1054 = vunpack.c.h.b16 %v951
        %v1055 = vunpack.c.l.b16 %v952
        %v1056 = vunpack.c.h.b16 %v952
        %v1057 = vunpack.c.l.b16 %v953
        %v1058 = vunpack.c.h.b16 %v953
        %v1059 = vpack.c.b16 %v997, %v995
        %v1060 = vpack.c.b16 %v998, %v996
        %v1061 = vpack.c.b16 %v1001, %v999
        %v1062 = vpack.c.b16 %v1002, %v1000
        %v1063 = vpack.c.b16 %v1005, %v1003
        %v1064 = vpack.c.b16 %v1006, %v1004
        %v1065 = vpack.c.b16 %v1009, %v1007
        %v1066 = vpack.c.b16 %v1010, %v1008
        %v1067 = vpack.c.b16 %v1013, %v1011
        %v1068 = vpack.c.b16 %v1014, %v1012
        %v1069 = vpack.c.b16 %v1017, %v1015
        %v1070 = vpack.c.b16 %v1018, %v1016
        %v1071 = vpack.c.b16 %v1021, %v1019
        %v1072 = vpack.c.b16 %v1022, %v1020
        %v1073 = vpack.c.b16 %v1025, %v1023
        %v1074 = vpack.c.b16 %v1026, %v1024
        %v1075 = vpack.c.b16 %v1029, %v1027
        %v1076 = vpack.c.b16 %v1030, %v1028
        %v1077 = vpack.c.b16 %v1033, %v1031
        %v1078 = vpack.c.b16 %v1034, %v1032
        %v1079 = vpack.c.b16 %v1037, %v1035
        %v1080 = vpack.c.b16 %v1038, %v1036
        %v1081 = vpack.c.b16 %v1041, %v1039
        %v1082 = vpack.c.b16 %v1042, %v1040
        %v1083 = vpack.c.b16 %v1045, %v1043
        %v1084 = vpack.c.b16 %v1046, %v1044
        %v1085 = vpack.c.b16 %v1049, %v1047
        %v1086 = vpack.c.b16 %v1050, %v1048
        %v1087 = vpack.c.b16 %v1053, %v1051
        %v1088 = vpack.c.b16 %v1054, %v1052
        %v1089 = vpack.c.b16 %v1057, %v1055
        %v1090 = vpack.c.b16 %v1058, %v1056
        %1123 = vmatprep.subr.bf16.mxu0 %v1060
        %1124 = vmatpush1.bf16.msra.mxu0 %v1059
        %1125 = vmatprep.subr.bf16.mxu0 %v1062
        %1126 = vmatpush1.bf16.msra.mxu0 %v1061
        %1127 = vmatprep.subr.bf16.mxu0 %v1064
        %1128 = vmatpush1.bf16.msra.mxu0 %v1063
        %1129 = vmatprep.subr.bf16.mxu0 %v1066
        %1130 = vmatpush1.bf16.msra.mxu0 %v1065
        %1131 = vmatprep.subr.bf16.mxu0 %v1068
        %1132 = vmatpush1.bf16.msra.mxu0 %v1067
        %1133 = vmatprep.subr.bf16.mxu0 %v1070
        %1134 = vmatpush1.bf16.msra.mxu0 %v1069
        %1135 = vmatprep.subr.bf16.mxu0 %v1072
        %1136 = vmatpush1.bf16.msra.mxu0 %v1071
        %1137 = vmatprep.subr.bf16.mxu0 %v1074
        %1138 = vmatpush1.bf16.msra.mxu0 %v1073
        %1139 = vmatprep.subr.bf16.mxu0 %v1076
        %1140 = vmatpush1.bf16.msra.mxu0 %v1075
        %1141 = vmatprep.subr.bf16.mxu0 %v1078
        %1142 = vmatpush1.bf16.msra.mxu0 %v1077
        %1143 = vmatprep.subr.bf16.mxu0 %v1080
        %1144 = vmatpush1.bf16.msra.mxu0 %v1079
        %1145 = vmatprep.subr.bf16.mxu0 %v1082
        %1146 = vmatpush1.bf16.msra.mxu0 %v1081
        %1147 = vmatprep.subr.bf16.mxu0 %v1084
        %1148 = vmatpush1.bf16.msra.mxu0 %v1083
        %1149 = vmatprep.subr.bf16.mxu0 %v1086
        %1150 = vmatpush1.bf16.msra.mxu0 %v1085
        %1151 = vmatprep.subr.bf16.mxu0 %v1088
        %1152 = vmatpush1.bf16.msra.mxu0 %v1087
        %1153 = vmatprep.subr.bf16.mxu0 %v1090
        %1154 = vmatpush1.bf16.msra.mxu0 %v1089
        %1155 = vmatprep.mubr.bf16.mxu0 %v960
        %1156 = vmatmul.mubr.bf16.gmra.mrb[0].mxu0 %v959
        %v1157 = vpop.f32.mrb[0].mxu0
        %v1158 = vadd.f32 0.0, %v1157
        %v1159 = vpop.f32.mrb[0].mxu0
        %v1160 = vadd.f32 0.0, %v1159
        %v1161 = vpop.f32.mrb[0].mxu0
        %v1162 = vpop.f32.mrb[0].mxu0
        %1163 = vdwg.mxu0
        %v1164 = vadd.f32 %v914, %v1158
        %v1165 = vadd.f32 %v916, %v1160
        %v1166 = vld [vmem:[#allocation10] sm:$0x3]
        %v1168 = vlaneseq
        %v1169 = vshrl.u32 %v1168, 7
        %v1170 = vsub.s32 0, %v1169
        %v1171 = vrot.slane %v1166, %v1170
        %v1172 = vlaneseq
        %v1173 = vshrl.u32 %v1172, 7
        %v1174 = vsub.s32 1, %v1173
        %v1175 = vrot.slane %v1166, %v1174
        %v1178 = vmul.f32 %v1164, %v1171
        %v1179 = vmul.f32 %v1165, %v1175
        %v1180 = vld [vmem:[#allocation12] sm:$0x3]
        %v1182 = vlaneseq
        %v1183 = vshrl.u32 %v1182, 7
        %v1184 = vsub.s32 0, %v1183
        %v1185 = vrot.slane %v1180, %v1184
        %v1186 = vlaneseq
        %v1187 = vshrl.u32 %v1186, 7
        %v1188 = vsub.s32 1, %v1187
        %v1189 = vrot.slane %v1180, %v1188
        %v1192 = vadd.f32 %v1178, %v1185
        %v1193 = vadd.f32 %v1179, %v1189
        %v1194 = vmax.f32 %v1192, 0.0
        %v1195 = vmax.f32 %v1193, 0.0
        %v1196 = vld [vmem:[#allocation3] sm:$0x11]
        %v1197 = vsel %vm381, 0, %v1196
        %1198 = vst [vmem:[#allocation3] sm:$0x11] %v1197
        %v1199 = vld [vmem:[#allocation3 + $0x8] sm:$0x11]
        %v1200 = vsel %vm389, 0, %v1199
        %1201 = vst [vmem:[#allocation3 + $0x8] sm:$0x11] %v1200
        %v1202 = vpack.c.bf16 %v1194, %v1194
        %v1203 = vpack.c.bf16 %v1195, %v1195
        %v1206 = vunpack.c.l.b16 %v1202
        %v1207 = vunpack.c.l.b16 %v1203
        %v1208 = vpack.c.b16 %v1207, %v1206
        %v1210 = vshrl.u32 %v1208, 16
        %v1212 = vrot.slane %v1210, 7
        %v1213 = vshll.u32 %v1208, 16
        %v1215 = vor.u32 %v1212, %v1213
        %v1216 = vrot.slane %v1212, 4
        %v1219 = vld [vmem:[#allocation3] sm:$0xff]
        %v1220 = vsel %vm416, %v1215, %v1219
        %1221 = vst [vmem:[#allocation3] sm:$0xff] %v1220
        %v1222 = vld [vmem:[#allocation3 + $0x8] sm:$0x11]
        %v1223 = vsel %vm381, %v1216, %v1222
        %1224 = vst [vmem:[#allocation3 + $0x8] sm:$0x11] %v1223
        %v1225 = vld [vmem:[#allocation3] sm:$0xff]
        %v1226 = vld [vmem:[#allocation9] sm:$0xff]
        %v1227 = vld [vmem:[#allocation9 + $0x8] sm:$0xff]
        %v1228 = vld [vmem:[#allocation9 + $0x10] sm:$0xff]
        %v1229 = vld [vmem:[#allocation9 + $0x18] sm:$0xff]
        %v1230 = vld [vmem:[#allocation9 + $0x20] sm:$0xff]
        %v1231 = vld [vmem:[#allocation9 + $0x28] sm:$0xff]
        %v1232 = vld [vmem:[#allocation9 + $0x30] sm:$0xff]
        %v1233 = vld [vmem:[#allocation9 + $0x38] sm:$0xff]
        %v1234 = vld [vmem:[#allocation9 + $0x40] sm:$0xff]
        %v1235 = vld [vmem:[#allocation9 + $0x48] sm:$0xff]
        %v1236 = vld [vmem:[#allocation9 + $0x50] sm:$0xff]
        %v1237 = vld [vmem:[#allocation9 + $0x58] sm:$0xff]
        %v1238 = vld [vmem:[#allocation9 + $0x60] sm:$0xff]
        %v1239 = vld [vmem:[#allocation9 + $0x68] sm:$0xff]
        %v1240 = vld [vmem:[#allocation9 + $0x70] sm:$0xff]
        %v1241 = vld [vmem:[#allocation9 + $0x78] sm:$0xff]
        %v1242 = vld [vmem:[#allocation9 + $0x80] sm:$0xff]
        %v1243 = vld [vmem:[#allocation9 + $0x88] sm:$0xff]
        %v1244 = vld [vmem:[#allocation9 + $0x90] sm:$0xff]
        %v1245 = vld [vmem:[#allocation9 + $0x98] sm:$0xff]
        %v1246 = vld [vmem:[#allocation9 + $0xa0] sm:$0xff]
        %v1247 = vld [vmem:[#allocation9 + $0xa8] sm:$0xff]
        %v1248 = vld [vmem:[#allocation9 + $0xb0] sm:$0xff]
        %v1249 = vld [vmem:[#allocation9 + $0xb8] sm:$0xff]
        %v1250 = vld [vmem:[#allocation9 + $0xc0] sm:$0xff]
        %v1251 = vld [vmem:[#allocation9 + $0xc8] sm:$0xff]
        %v1252 = vld [vmem:[#allocation9 + $0xd0] sm:$0xff]
        %v1253 = vld [vmem:[#allocation9 + $0xd8] sm:$0xff]
        %v1254 = vld [vmem:[#allocation9 + $0xe0] sm:$0xff]
        %v1255 = vld [vmem:[#allocation9 + $0xe8] sm:$0xff]
        %v1256 = vld [vmem:[#allocation9 + $0xf0] sm:$0xff]
        %v1257 = vld [vmem:[#allocation9 + $0xf8] sm:$0xff]
        %v1258 = vld [vmem:[#allocation3 + $0x8] sm:$0x11]
        %s1259 = scalar_lea.vmem [#allocation9], 256
        %v1260 = vld [vmem:[%s1259] sm:$0xff]
        %v1261 = vld [vmem:[%s1259 + $0x8] sm:$0xff]
        %v1262 = vld [vmem:[%s1259 + $0x10] sm:$0xff]
        %v1263 = vld [vmem:[%s1259 + $0x18] sm:$0xff]
        %v1264 = vld [vmem:[%s1259 + $0x20] sm:$0xff]
        %v1265 = vld [vmem:[%s1259 + $0x28] sm:$0xff]
        %v1266 = vld [vmem:[%s1259 + $0x30] sm:$0xff]
        %v1267 = vld [vmem:[%s1259 + $0x38] sm:$0xff]
        %v1268 = vld [vmem:[%s1259 + $0x40] sm:$0xff]
        %v1269 = vld [vmem:[%s1259 + $0x48] sm:$0xff]
        %v1270 = vld [vmem:[%s1259 + $0x50] sm:$0xff]
        %v1271 = vld [vmem:[%s1259 + $0x58] sm:$0xff]
        %v1272 = vld [vmem:[%s1259 + $0x60] sm:$0xff]
        %v1273 = vld [vmem:[%s1259 + $0x68] sm:$0xff]
        %v1274 = vld [vmem:[%s1259 + $0x70] sm:$0xff]
        %v1275 = vld [vmem:[%s1259 + $0x78] sm:$0xff]
        %v1276 = vld [vmem:[%s1259 + $0x80] sm:$0xff]
        %v1277 = vld [vmem:[%s1259 + $0x88] sm:$0xff]
        %v1278 = vld [vmem:[%s1259 + $0x90] sm:$0xff]
        %v1279 = vld [vmem:[%s1259 + $0x98] sm:$0xff]
        %v1280 = vld [vmem:[%s1259 + $0xa0] sm:$0xff]
        %v1281 = vld [vmem:[%s1259 + $0xa8] sm:$0xff]
        %v1282 = vld [vmem:[%s1259 + $0xb0] sm:$0xff]
        %v1283 = vld [vmem:[%s1259 + $0xb8] sm:$0xff]
        %v1284 = vld [vmem:[%s1259 + $0xc0] sm:$0xff]
        %v1285 = vld [vmem:[%s1259 + $0xc8] sm:$0xff]
        %v1286 = vld [vmem:[%s1259 + $0xd0] sm:$0xff]
        %v1287 = vld [vmem:[%s1259 + $0xd8] sm:$0xff]
        %v1288 = vld [vmem:[%s1259 + $0xe0] sm:$0xff]
        %v1289 = vld [vmem:[%s1259 + $0xe8] sm:$0xff]
        %v1290 = vld [vmem:[%s1259 + $0xf0] sm:$0xff]
        %v1291 = vld [vmem:[%s1259 + $0xf8] sm:$0xff]
        %v1294 = vunpack.c.l.b16 %v1225
        %v1295 = vunpack.c.h.b16 %v1225
        %v1296 = vunpack.c.l.b16 %v1258
        %v1297 = vunpack.c.h.b16 %v1258
        %v1298 = vpack.c.b16 %v1296, %v1294
        %v1299 = vpack.c.b16 %v1297, %v1295
        %v1301 = vshrl.u32 %v1298, 16
        %v1303 = vshll.u32 %v1298, 16
        %v1305 = vrot.slane %v1303, 1
        %v1306 = vor.u32 %v1301, %v1305
        %v1308 = vshrl.u32 %v1299, 16
        %v1310 = vshll.u32 %v1299, 16
        %v1312 = vrot.slane %v1310, 1
        %v1313 = vor.u32 %v1308, %v1312
        %v1348 = vunpack.c.l.b16 %v1260
        %v1349 = vunpack.c.h.b16 %v1260
        %v1350 = vunpack.c.l.b16 %v1261
        %v1351 = vunpack.c.h.b16 %v1261
        %v1352 = vunpack.c.l.b16 %v1262
        %v1353 = vunpack.c.h.b16 %v1262
        %v1354 = vunpack.c.l.b16 %v1263
        %v1355 = vunpack.c.h.b16 %v1263
        %v1356 = vunpack.c.l.b16 %v1264
        %v1357 = vunpack.c.h.b16 %v1264
        %v1358 = vunpack.c.l.b16 %v1265
        %v1359 = vunpack.c.h.b16 %v1265
        %v1360 = vunpack.c.l.b16 %v1266
        %v1361 = vunpack.c.h.b16 %v1266
        %v1362 = vunpack.c.l.b16 %v1267
        %v1363 = vunpack.c.h.b16 %v1267
        %v1364 = vunpack.c.l.b16 %v1268
        %v1365 = vunpack.c.h.b16 %v1268
        %v1366 = vunpack.c.l.b16 %v1269
        %v1367 = vunpack.c.h.b16 %v1269
        %v1368 = vunpack.c.l.b16 %v1270
        %v1369 = vunpack.c.h.b16 %v1270
        %v1370 = vunpack.c.l.b16 %v1271
        %v1371 = vunpack.c.h.b16 %v1271
        %v1372 = vunpack.c.l.b16 %v1272
        %v1373 = vunpack.c.h.b16 %v1272
        %v1374 = vunpack.c.l.b16 %v1273
        %v1375 = vunpack.c.h.b16 %v1273
        %v1376 = vunpack.c.l.b16 %v1274
        %v1377 = vunpack.c.h.b16 %v1274
        %v1378 = vunpack.c.l.b16 %v1275
        %v1379 = vunpack.c.h.b16 %v1275
        %v1380 = vunpack.c.l.b16 %v1276
        %v1381 = vunpack.c.h.b16 %v1276
        %v1382 = vunpack.c.l.b16 %v1277
        %v1383 = vunpack.c.h.b16 %v1277
        %v1384 = vunpack.c.l.b16 %v1278
        %v1385 = vunpack.c.h.b16 %v1278
        %v1386 = vunpack.c.l.b16 %v1279
        %v1387 = vunpack.c.h.b16 %v1279
        %v1388 = vunpack.c.l.b16 %v1280
        %v1389 = vunpack.c.h.b16 %v1280
        %v1390 = vunpack.c.l.b16 %v1281
        %v1391 = vunpack.c.h.b16 %v1281
        %v1392 = vunpack.c.l.b16 %v1282
        %v1393 = vunpack.c.h.b16 %v1282
        %v1394 = vunpack.c.l.b16 %v1283
        %v1395 = vunpack.c.h.b16 %v1283
        %v1396 = vunpack.c.l.b16 %v1284
        %v1397 = vunpack.c.h.b16 %v1284
        %v1398 = vunpack.c.l.b16 %v1285
        %v1399 = vunpack.c.h.b16 %v1285
        %v1400 = vunpack.c.l.b16 %v1286
        %v1401 = vunpack.c.h.b16 %v1286
        %v1402 = vunpack.c.l.b16 %v1287
        %v1403 = vunpack.c.h.b16 %v1287
        %v1404 = vunpack.c.l.b16 %v1288
        %v1405 = vunpack.c.h.b16 %v1288
        %v1406 = vunpack.c.l.b16 %v1289
        %v1407 = vunpack.c.h.b16 %v1289
        %v1408 = vunpack.c.l.b16 %v1290
        %v1409 = vunpack.c.h.b16 %v1290
        %v1410 = vunpack.c.l.b16 %v1291
        %v1411 = vunpack.c.h.b16 %v1291
        %v1412 = vpack.c.b16 %v1350, %v1348
        %v1413 = vpack.c.b16 %v1351, %v1349
        %v1414 = vpack.c.b16 %v1354, %v1352
        %v1415 = vpack.c.b16 %v1355, %v1353
        %v1416 = vpack.c.b16 %v1358, %v1356
        %v1417 = vpack.c.b16 %v1359, %v1357
        %v1418 = vpack.c.b16 %v1362, %v1360
        %v1419 = vpack.c.b16 %v1363, %v1361
        %v1420 = vpack.c.b16 %v1366, %v1364
        %v1421 = vpack.c.b16 %v1367, %v1365
        %v1422 = vpack.c.b16 %v1370, %v1368
        %v1423 = vpack.c.b16 %v1371, %v1369
        %v1424 = vpack.c.b16 %v1374, %v1372
        %v1425 = vpack.c.b16 %v1375, %v1373
        %v1426 = vpack.c.b16 %v1378, %v1376
        %v1427 = vpack.c.b16 %v1379, %v1377
        %v1428 = vpack.c.b16 %v1382, %v1380
        %v1429 = vpack.c.b16 %v1383, %v1381
        %v1430 = vpack.c.b16 %v1386, %v1384
        %v1431 = vpack.c.b16 %v1387, %v1385
        %v1432 = vpack.c.b16 %v1390, %v1388
        %v1433 = vpack.c.b16 %v1391, %v1389
        %v1434 = vpack.c.b16 %v1394, %v1392
        %v1435 = vpack.c.b16 %v1395, %v1393
        %v1436 = vpack.c.b16 %v1398, %v1396
        %v1437 = vpack.c.b16 %v1399, %v1397
        %v1438 = vpack.c.b16 %v1402, %v1400
        %v1439 = vpack.c.b16 %v1403, %v1401
        %v1440 = vpack.c.b16 %v1406, %v1404
        %v1441 = vpack.c.b16 %v1407, %v1405
        %v1442 = vpack.c.b16 %v1410, %v1408
        %v1443 = vpack.c.b16 %v1411, %v1409
        %1476 = vmatprep.subr.bf16.mxu0 %v1413
        %1477 = vmatpush1.bf16.msra.mxu0 %v1412
        %1478 = vmatprep.subr.bf16.mxu0 %v1415
        %1479 = vmatpush1.bf16.msra.mxu0 %v1414
        %1480 = vmatprep.subr.bf16.mxu0 %v1417
        %1481 = vmatpush1.bf16.msra.mxu0 %v1416
        %1482 = vmatprep.subr.bf16.mxu0 %v1419
        %1483 = vmatpush1.bf16.msra.mxu0 %v1418
        %1484 = vmatprep.subr.bf16.mxu0 %v1421
        %1485 = vmatpush1.bf16.msra.mxu0 %v1420
        %1486 = vmatprep.subr.bf16.mxu0 %v1423
        %1487 = vmatpush1.bf16.msra.mxu0 %v1422
        %1488 = vmatprep.subr.bf16.mxu0 %v1425
        %1489 = vmatpush1.bf16.msra.mxu0 %v1424
        %1490 = vmatprep.subr.bf16.mxu0 %v1427
        %1491 = vmatpush1.bf16.msra.mxu0 %v1426
        %1492 = vmatprep.subr.bf16.mxu0 %v1429
        %1493 = vmatpush1.bf16.msra.mxu0 %v1428
        %1494 = vmatprep.subr.bf16.mxu0 %v1431
        %1495 = vmatpush1.bf16.msra.mxu0 %v1430
        %1496 = vmatprep.subr.bf16.mxu0 %v1433
        %1497 = vmatpush1.bf16.msra.mxu0 %v1432
        %1498 = vmatprep.subr.bf16.mxu0 %v1435
        %1499 = vmatpush1.bf16.msra.mxu0 %v1434
        %1500 = vmatprep.subr.bf16.mxu0 %v1437
        %1501 = vmatpush1.bf16.msra.mxu0 %v1436
        %1502 = vmatprep.subr.bf16.mxu0 %v1439
        %1503 = vmatpush1.bf16.msra.mxu0 %v1438
        %1504 = vmatprep.subr.bf16.mxu0 %v1441
        %1505 = vmatpush1.bf16.msra.mxu0 %v1440
        %1506 = vmatprep.subr.bf16.mxu0 %v1443
        %1507 = vmatpush1.bf16.msra.mxu0 %v1442
        %1508 = vmatprep.mubr.bf16.mxu0 %v1313
        %1509 = vmatmul.mubr.bf16.gmra.mrb[0].mxu0 %v1306
        %v1510 = vpop.f32.mrb[0].mxu0
        %v1511 = vadd.f32 0.0, %v1510
        %v1512 = vpop.f32.mrb[0].mxu0
        %v1513 = vadd.f32 0.0, %v1512
        %v1514 = vpop.f32.mrb[0].mxu0
        %v1515 = vpop.f32.mrb[0].mxu0
        %1516 = vdwg.mxu0
        %v1517 = vpack.c.b16 %v1294, %v1294
        %v1518 = vpack.c.b16 %v1295, %v1295
        %v1553 = vunpack.c.l.b16 %v1226
        %v1554 = vunpack.c.h.b16 %v1226
        %v1555 = vunpack.c.l.b16 %v1227
        %v1556 = vunpack.c.h.b16 %v1227
        %v1557 = vunpack.c.l.b16 %v1228
        %v1558 = vunpack.c.h.b16 %v1228
        %v1559 = vunpack.c.l.b16 %v1229
        %v1560 = vunpack.c.h.b16 %v1229
        %v1561 = vunpack.c.l.b16 %v1230
        %v1562 = vunpack.c.h.b16 %v1230
        %v1563 = vunpack.c.l.b16 %v1231
        %v1564 = vunpack.c.h.b16 %v1231
        %v1565 = vunpack.c.l.b16 %v1232
        %v1566 = vunpack.c.h.b16 %v1232
        %v1567 = vunpack.c.l.b16 %v1233
        %v1568 = vunpack.c.h.b16 %v1233
        %v1569 = vunpack.c.l.b16 %v1234
        %v1570 = vunpack.c.h.b16 %v1234
        %v1571 = vunpack.c.l.b16 %v1235
        %v1572 = vunpack.c.h.b16 %v1235
        %v1573 = vunpack.c.l.b16 %v1236
        %v1574 = vunpack.c.h.b16 %v1236
        %v1575 = vunpack.c.l.b16 %v1237
        %v1576 = vunpack.c.h.b16 %v1237
        %v1577 = vunpack.c.l.b16 %v1238
        %v1578 = vunpack.c.h.b16 %v1238
        %v1579 = vunpack.c.l.b16 %v1239
        %v1580 = vunpack.c.h.b16 %v1239
        %v1581 = vunpack.c.l.b16 %v1240
        %v1582 = vunpack.c.h.b16 %v1240
        %v1583 = vunpack.c.l.b16 %v1241
        %v1584 = vunpack.c.h.b16 %v1241
        %v1585 = vunpack.c.l.b16 %v1242
        %v1586 = vunpack.c.h.b16 %v1242
        %v1587 = vunpack.c.l.b16 %v1243
        %v1588 = vunpack.c.h.b16 %v1243
        %v1589 = vunpack.c.l.b16 %v1244
        %v1590 = vunpack.c.h.b16 %v1244
        %v1591 = vunpack.c.l.b16 %v1245
        %v1592 = vunpack.c.h.b16 %v1245
        %v1593 = vunpack.c.l.b16 %v1246
        %v1594 = vunpack.c.h.b16 %v1246
        %v1595 = vunpack.c.l.b16 %v1247
        %v1596 = vunpack.c.h.b16 %v1247
        %v1597 = vunpack.c.l.b16 %v1248
        %v1598 = vunpack.c.h.b16 %v1248
        %v1599 = vunpack.c.l.b16 %v1249
        %v1600 = vunpack.c.h.b16 %v1249
        %v1601 = vunpack.c.l.b16 %v1250
        %v1602 = vunpack.c.h.b16 %v1250
        %v1603 = vunpack.c.l.b16 %v1251
        %v1604 = vunpack.c.h.b16 %v1251
        %v1605 = vunpack.c.l.b16 %v1252
        %v1606 = vunpack.c.h.b16 %v1252
        %v1607 = vunpack.c.l.b16 %v1253
        %v1608 = vunpack.c.h.b16 %v1253
        %v1609 = vunpack.c.l.b16 %v1254
        %v1610 = vunpack.c.h.b16 %v1254
        %v1611 = vunpack.c.l.b16 %v1255
        %v1612 = vunpack.c.h.b16 %v1255
        %v1613 = vunpack.c.l.b16 %v1256
        %v1614 = vunpack.c.h.b16 %v1256
        %v1615 = vunpack.c.l.b16 %v1257
        %v1616 = vunpack.c.h.b16 %v1257
        %v1617 = vpack.c.b16 %v1555, %v1553
        %v1618 = vpack.c.b16 %v1556, %v1554
        %v1619 = vpack.c.b16 %v1559, %v1557
        %v1620 = vpack.c.b16 %v1560, %v1558
        %v1621 = vpack.c.b16 %v1563, %v1561
        %v1622 = vpack.c.b16 %v1564, %v1562
        %v1623 = vpack.c.b16 %v1567, %v1565
        %v1624 = vpack.c.b16 %v1568, %v1566
        %v1625 = vpack.c.b16 %v1571, %v1569
        %v1626 = vpack.c.b16 %v1572, %v1570
        %v1627 = vpack.c.b16 %v1575, %v1573
        %v1628 = vpack.c.b16 %v1576, %v1574
        %v1629 = vpack.c.b16 %v1579, %v1577
        %v1630 = vpack.c.b16 %v1580, %v1578
        %v1631 = vpack.c.b16 %v1583, %v1581
        %v1632 = vpack.c.b16 %v1584, %v1582
        %v1633 = vpack.c.b16 %v1587, %v1585
        %v1634 = vpack.c.b16 %v1588, %v1586
        %v1635 = vpack.c.b16 %v1591, %v1589
        %v1636 = vpack.c.b16 %v1592, %v1590
        %v1637 = vpack.c.b16 %v1595, %v1593
        %v1638 = vpack.c.b16 %v1596, %v1594
        %v1639 = vpack.c.b16 %v1599, %v1597
        %v1640 = vpack.c.b16 %v1600, %v1598
        %v1641 = vpack.c.b16 %v1603, %v1601
        %v1642 = vpack.c.b16 %v1604, %v1602
        %v1643 = vpack.c.b16 %v1607, %v1605
        %v1644 = vpack.c.b16 %v1608, %v1606
        %v1645 = vpack.c.b16 %v1611, %v1609
        %v1646 = vpack.c.b16 %v1612, %v1610
        %v1647 = vpack.c.b16 %v1615, %v1613
        %v1648 = vpack.c.b16 %v1616, %v1614
        %1681 = vmatprep.subr.bf16.mxu0 %v1618
        %1682 = vmatpush1.bf16.msra.mxu0 %v1617
        %1683 = vmatprep.subr.bf16.mxu0 %v1620
        %1684 = vmatpush1.bf16.msra.mxu0 %v1619
        %1685 = vmatprep.subr.bf16.mxu0 %v1622
        %1686 = vmatpush1.bf16.msra.mxu0 %v1621
        %1687 = vmatprep.subr.bf16.mxu0 %v1624
        %1688 = vmatpush1.bf16.msra.mxu0 %v1623
        %1689 = vmatprep.subr.bf16.mxu0 %v1626
        %1690 = vmatpush1.bf16.msra.mxu0 %v1625
        %1691 = vmatprep.subr.bf16.mxu0 %v1628
        %1692 = vmatpush1.bf16.msra.mxu0 %v1627
        %1693 = vmatprep.subr.bf16.mxu0 %v1630
        %1694 = vmatpush1.bf16.msra.mxu0 %v1629
        %1695 = vmatprep.subr.bf16.mxu0 %v1632
        %1696 = vmatpush1.bf16.msra.mxu0 %v1631
        %1697 = vmatprep.subr.bf16.mxu0 %v1634
        %1698 = vmatpush1.bf16.msra.mxu0 %v1633
        %1699 = vmatprep.subr.bf16.mxu0 %v1636
        %1700 = vmatpush1.bf16.msra.mxu0 %v1635
        %1701 = vmatprep.subr.bf16.mxu0 %v1638
        %1702 = vmatpush1.bf16.msra.mxu0 %v1637
        %1703 = vmatprep.subr.bf16.mxu0 %v1640
        %1704 = vmatpush1.bf16.msra.mxu0 %v1639
        %1705 = vmatprep.subr.bf16.mxu0 %v1642
        %1706 = vmatpush1.bf16.msra.mxu0 %v1641
        %1707 = vmatprep.subr.bf16.mxu0 %v1644
        %1708 = vmatpush1.bf16.msra.mxu0 %v1643
        %1709 = vmatprep.subr.bf16.mxu0 %v1646
        %1710 = vmatpush1.bf16.msra.mxu0 %v1645
        %1711 = vmatprep.subr.bf16.mxu0 %v1648
        %1712 = vmatpush1.bf16.msra.mxu0 %v1647
        %1713 = vmatprep.mubr.bf16.mxu0 %v1518
        %1714 = vmatmul.mubr.bf16.gmra.mrb[0].mxu0 %v1517
        %v1715 = vpop.f32.mrb[0].mxu0
        %v1716 = vadd.f32 %v1511, %v1715
        %v1717 = vpop.f32.mrb[0].mxu0
        %v1718 = vadd.f32 %v1513, %v1717
        %v1719 = vpop.f32.mrb[0].mxu0
        %v1720 = vpop.f32.mrb[0].mxu0
        %1721 = vdwg.mxu0
        %v1722 = vld [vmem:[#allocation3] sm:$0xee]
        %s1723 = scalar_lea.vmem [#allocation9], 512
        %v1724 = vld [vmem:[%s1723] sm:$0xff]
        %v1725 = vld [vmem:[%s1723 + $0x8] sm:$0xff]
        %v1726 = vld [vmem:[%s1723 + $0x10] sm:$0xff]
        %v1727 = vld [vmem:[%s1723 + $0x18] sm:$0xff]
        %v1728 = vld [vmem:[%s1723 + $0x20] sm:$0xff]
        %v1729 = vld [vmem:[%s1723 + $0x28] sm:$0xff]
        %v1730 = vld [vmem:[%s1723 + $0x30] sm:$0xff]
        %v1731 = vld [vmem:[%s1723 + $0x38] sm:$0xff]
        %v1732 = vld [vmem:[%s1723 + $0x40] sm:$0xff]
        %v1733 = vld [vmem:[%s1723 + $0x48] sm:$0xff]
        %v1734 = vld [vmem:[%s1723 + $0x50] sm:$0xff]
        %v1735 = vld [vmem:[%s1723 + $0x58] sm:$0xff]
        %v1736 = vld [vmem:[%s1723 + $0x60] sm:$0xff]
        %v1737 = vld [vmem:[%s1723 + $0x68] sm:$0xff]
        %v1738 = vld [vmem:[%s1723 + $0x70] sm:$0xff]
        %v1739 = vld [vmem:[%s1723 + $0x78] sm:$0xff]
        %v1740 = vld [vmem:[%s1723 + $0x80] sm:$0xff]
        %v1741 = vld [vmem:[%s1723 + $0x88] sm:$0xff]
        %v1742 = vld [vmem:[%s1723 + $0x90] sm:$0xff]
        %v1743 = vld [vmem:[%s1723 + $0x98] sm:$0xff]
        %v1744 = vld [vmem:[%s1723 + $0xa0] sm:$0xff]
        %v1745 = vld [vmem:[%s1723 + $0xa8] sm:$0xff]
        %v1746 = vld [vmem:[%s1723 + $0xb0] sm:$0xff]
        %v1747 = vld [vmem:[%s1723 + $0xb8] sm:$0xff]
        %v1748 = vld [vmem:[%s1723 + $0xc0] sm:$0xff]
        %v1749 = vld [vmem:[%s1723 + $0xc8] sm:$0xff]
        %v1750 = vld [vmem:[%s1723 + $0xd0] sm:$0xff]
        %v1751 = vld [vmem:[%s1723 + $0xd8] sm:$0xff]
        %v1752 = vld [vmem:[%s1723 + $0xe0] sm:$0xff]
        %v1753 = vld [vmem:[%s1723 + $0xe8] sm:$0xff]
        %v1754 = vld [vmem:[%s1723 + $0xf0] sm:$0xff]
        %v1755 = vld [vmem:[%s1723 + $0xf8] sm:$0xff]
        %v1757 = vunpack.c.l.b16 %v1722
        %v1758 = vunpack.c.h.b16 %v1722
        %v1759 = vpack.c.b16 %v1296, %v1757
        %v1760 = vpack.c.b16 %v1297, %v1758
        %v1761 = vrot.slane %v1759, 1
        %v1762 = vrot.slane %v1760, 1
        %v1797 = vunpack.c.l.b16 %v1724
        %v1798 = vunpack.c.h.b16 %v1724
        %v1799 = vunpack.c.l.b16 %v1725
        %v1800 = vunpack.c.h.b16 %v1725
        %v1801 = vunpack.c.l.b16 %v1726
        %v1802 = vunpack.c.h.b16 %v1726
        %v1803 = vunpack.c.l.b16 %v1727
        %v1804 = vunpack.c.h.b16 %v1727
        %v1805 = vunpack.c.l.b16 %v1728
        %v1806 = vunpack.c.h.b16 %v1728
        %v1807 = vunpack.c.l.b16 %v1729
        %v1808 = vunpack.c.h.b16 %v1729
        %v1809 = vunpack.c.l.b16 %v1730
        %v1810 = vunpack.c.h.b16 %v1730
        %v1811 = vunpack.c.l.b16 %v1731
        %v1812 = vunpack.c.h.b16 %v1731
        %v1813 = vunpack.c.l.b16 %v1732
        %v1814 = vunpack.c.h.b16 %v1732
        %v1815 = vunpack.c.l.b16 %v1733
        %v1816 = vunpack.c.h.b16 %v1733
        %v1817 = vunpack.c.l.b16 %v1734
        %v1818 = vunpack.c.h.b16 %v1734
        %v1819 = vunpack.c.l.b16 %v1735
        %v1820 = vunpack.c.h.b16 %v1735
        %v1821 = vunpack.c.l.b16 %v1736
        %v1822 = vunpack.c.h.b16 %v1736
        %v1823 = vunpack.c.l.b16 %v1737
        %v1824 = vunpack.c.h.b16 %v1737
        %v1825 = vunpack.c.l.b16 %v1738
        %v1826 = vunpack.c.h.b16 %v1738
        %v1827 = vunpack.c.l.b16 %v1739
        %v1828 = vunpack.c.h.b16 %v1739
        %v1829 = vunpack.c.l.b16 %v1740
        %v1830 = vunpack.c.h.b16 %v1740
        %v1831 = vunpack.c.l.b16 %v1741
        %v1832 = vunpack.c.h.b16 %v1741
        %v1833 = vunpack.c.l.b16 %v1742
        %v1834 = vunpack.c.h.b16 %v1742
        %v1835 = vunpack.c.l.b16 %v1743
        %v1836 = vunpack.c.h.b16 %v1743
        %v1837 = vunpack.c.l.b16 %v1744
        %v1838 = vunpack.c.h.b16 %v1744
        %v1839 = vunpack.c.l.b16 %v1745
        %v1840 = vunpack.c.h.b16 %v1745
        %v1841 = vunpack.c.l.b16 %v1746
        %v1842 = vunpack.c.h.b16 %v1746
        %v1843 = vunpack.c.l.b16 %v1747
        %v1844 = vunpack.c.h.b16 %v1747
        %v1845 = vunpack.c.l.b16 %v1748
        %v1846 = vunpack.c.h.b16 %v1748
        %v1847 = vunpack.c.l.b16 %v1749
        %v1848 = vunpack.c.h.b16 %v1749
        %v1849 = vunpack.c.l.b16 %v1750
        %v1850 = vunpack.c.h.b16 %v1750
        %v1851 = vunpack.c.l.b16 %v1751
        %v1852 = vunpack.c.h.b16 %v1751
        %v1853 = vunpack.c.l.b16 %v1752
        %v1854 = vunpack.c.h.b16 %v1752
        %v1855 = vunpack.c.l.b16 %v1753
        %v1856 = vunpack.c.h.b16 %v1753
        %v1857 = vunpack.c.l.b16 %v1754
        %v1858 = vunpack.c.h.b16 %v1754
        %v1859 = vunpack.c.l.b16 %v1755
        %v1860 = vunpack.c.h.b16 %v1755
        %v1861 = vpack.c.b16 %v1799, %v1797
        %v1862 = vpack.c.b16 %v1800, %v1798
        %v1863 = vpack.c.b16 %v1803, %v1801
        %v1864 = vpack.c.b16 %v1804, %v1802
        %v1865 = vpack.c.b16 %v1807, %v1805
        %v1866 = vpack.c.b16 %v1808, %v1806
        %v1867 = vpack.c.b16 %v1811, %v1809
        %v1868 = vpack.c.b16 %v1812, %v1810
        %v1869 = vpack.c.b16 %v1815, %v1813
        %v1870 = vpack.c.b16 %v1816, %v1814
        %v1871 = vpack.c.b16 %v1819, %v1817
        %v1872 = vpack.c.b16 %v1820, %v1818
        %v1873 = vpack.c.b16 %v1823, %v1821
        %v1874 = vpack.c.b16 %v1824, %v1822
        %v1875 = vpack.c.b16 %v1827, %v1825
        %v1876 = vpack.c.b16 %v1828, %v1826
        %v1877 = vpack.c.b16 %v1831, %v1829
        %v1878 = vpack.c.b16 %v1832, %v1830
        %v1879 = vpack.c.b16 %v1835, %v1833
        %v1880 = vpack.c.b16 %v1836, %v1834
        %v1881 = vpack.c.b16 %v1839, %v1837
        %v1882 = vpack.c.b16 %v1840, %v1838
        %v1883 = vpack.c.b16 %v1843, %v1841
        %v1884 = vpack.c.b16 %v1844, %v1842
        %v1885 = vpack.c.b16 %v1847, %v1845
        %v1886 = vpack.c.b16 %v1848, %v1846
        %v1887 = vpack.c.b16 %v1851, %v1849
        %v1888 = vpack.c.b16 %v1852, %v1850
        %v1889 = vpack.c.b16 %v1855, %v1853
        %v1890 = vpack.c.b16 %v1856, %v1854
        %v1891 = vpack.c.b16 %v1859, %v1857
        %v1892 = vpack.c.b16 %v1860, %v1858
        %1925 = vmatprep.subr.bf16.mxu0 %v1862
        %1926 = vmatpush1.bf16.msra.mxu0 %v1861
        %1927 = vmatprep.subr.bf16.mxu0 %v1864
        %1928 = vmatpush1.bf16.msra.mxu0 %v1863
        %1929 = vmatprep.subr.bf16.mxu0 %v1866
        %1930 = vmatpush1.bf16.msra.mxu0 %v1865
        %1931 = vmatprep.subr.bf16.mxu0 %v1868
        %1932 = vmatpush1.bf16.msra.mxu0 %v1867
        %1933 = vmatprep.subr.bf16.mxu0 %v1870
        %1934 = vmatpush1.bf16.msra.mxu0 %v1869
        %1935 = vmatprep.subr.bf16.mxu0 %v1872
        %1936 = vmatpush1.bf16.msra.mxu0 %v1871
        %1937 = vmatprep.subr.bf16.mxu0 %v1874
        %1938 = vmatpush1.bf16.msra.mxu0 %v1873
        %1939 = vmatprep.subr.bf16.mxu0 %v1876
        %1940 = vmatpush1.bf16.msra.mxu0 %v1875
        %1941 = vmatprep.subr.bf16.mxu0 %v1878
        %1942 = vmatpush1.bf16.msra.mxu0 %v1877
        %1943 = vmatprep.subr.bf16.mxu0 %v1880
        %1944 = vmatpush1.bf16.msra.mxu0 %v1879
        %1945 = vmatprep.subr.bf16.mxu0 %v1882
        %1946 = vmatpush1.bf16.msra.mxu0 %v1881
        %1947 = vmatprep.subr.bf16.mxu0 %v1884
        %1948 = vmatpush1.bf16.msra.mxu0 %v1883
        %1949 = vmatprep.subr.bf16.mxu0 %v1886
        %1950 = vmatpush1.bf16.msra.mxu0 %v1885
        %1951 = vmatprep.subr.bf16.mxu0 %v1888
        %1952 = vmatpush1.bf16.msra.mxu0 %v1887
        %1953 = vmatprep.subr.bf16.mxu0 %v1890
        %1954 = vmatpush1.bf16.msra.mxu0 %v1889
        %1955 = vmatprep.subr.bf16.mxu0 %v1892
        %1956 = vmatpush1.bf16.msra.mxu0 %v1891
        %1957 = vmatprep.mubr.bf16.mxu0 %v1762
        %1958 = vmatmul.mubr.bf16.gmra.mrb[0].mxu0 %v1761
        %v1959 = vpop.f32.mrb[0].mxu0
        %v1960 = vadd.f32 0.0, %v1959
        %v1961 = vpop.f32.mrb[0].mxu0
        %v1962 = vadd.f32 0.0, %v1961
        %v1963 = vpop.f32.mrb[0].mxu0
        %v1964 = vpop.f32.mrb[0].mxu0
        %1965 = vdwg.mxu0
        %v1966 = vadd.f32 %v1716, %v1960
        %v1967 = vadd.f32 %v1718, %v1962
        %v1968 = vld [vmem:[#allocation13] sm:$0x3]
        %v1970 = vlaneseq
        %v1971 = vshrl.u32 %v1970, 7
        %v1972 = vsub.s32 0, %v1971
        %v1973 = vrot.slane %v1968, %v1972
        %v1974 = vlaneseq
        %v1975 = vshrl.u32 %v1974, 7
        %v1976 = vsub.s32 1, %v1975
        %v1977 = vrot.slane %v1968, %v1976
        %v1980 = vmul.f32 %v1966, %v1973
        %v1981 = vmul.f32 %v1967, %v1977
        %v1982 = vld [vmem:[#allocation15] sm:$0x3]
        %v1984 = vlaneseq
        %v1985 = vshrl.u32 %v1984, 7
        %v1986 = vsub.s32 0, %v1985
        %v1987 = vrot.slane %v1982, %v1986
        %v1988 = vlaneseq
        %v1989 = vshrl.u32 %v1988, 7
        %v1990 = vsub.s32 1, %v1989
        %v1991 = vrot.slane %v1982, %v1990
        %v1994 = vadd.f32 %v1980, %v1987
        %v1995 = vadd.f32 %v1981, %v1991
        %v1996 = vld [vmem:[%s319] sm:$0xff]
        %v1997 = vld [vmem:[%s319 + $0x8] sm:$0xff]
        %v1998 = vadd.f32 %v1994, %v1996
        %v1999 = vadd.f32 %v1995, %v1997
        %v2000 = vmax.f32 %v1998, 0.0
        %v2001 = vmax.f32 %v1999, 0.0
        %2002 = vst [vmem:[%s373] sm:$0xff] %v2000
        %2003 = vst [vmem:[%s373 + $0x8] sm:$0xff] %v2001
        %s2004 = sand.u32 %s187, 1
        %s2005 = scalar_lea.sflag [#allocation6], %s2004
        %s2006 = sand.u32 %s187, 1
        %s2007 = smul.addr %s2006, 16
        %s2008 = scalar_lea.vmem [#allocation16], %s2007
        // Predicated region
        $region77: #{tpu_custom_call.1} parent=47 // pred_check
          %p2009 = pneg %p197
        $region78: #{tpu_custom_call.1} parent=47 // pred_check_branch
          %2011 = sbr.rel (%p2009) target = $region80
        $region79: #{tpu_custom_call.1} parent=47 // pred_region
          %s2013 = ssub.s32 256, 256
          %2014 = vsyncadd %s2005, %s2013
          %s2015 = smul.addr %s27, 2
          %s2016 = smul.addr %s2015, 128
          %s2017 = scalar_lea.hbm %s7, %s2016
          %s2019 = sshll.u32 %s2008, 4
          %s2020 = int_to_ptr.vmem [resolvable:$true] %s2019
          %2022 = dma.vmem_to_hbm [thread:$0]  %s2020, 256, %s2017, %s2005
        $region80: #{tpu_custom_call.1} parent=47 // pred_fallthru
          _
      $region48: #{tpu_custom_call.1} parent=5 // pred_fallthru
        _
      %p2023 = scmp.le.s32.totalorder 2, %s22
      // Predicated region
      $region81: #{tpu_custom_call.1} parent=5 // pred_check
        %p2024 = pneg %p2023
      $region82: #{tpu_custom_call.1} parent=5 // pred_check_branch
        %2026 = sbr.rel (%p2024) target = $region84
      $region83: #{tpu_custom_call.1} parent=5 // pred_region
        %s2027 = ssub.s32 %s22, 2
        // Predicated region
        $region85: #{tpu_custom_call.1} parent=83 // pred_check
          %p2028 = pneg %p203
        $region86: #{tpu_custom_call.1} parent=83 // pred_check_branch
          %2030 = sbr.rel (%p2028) target = $region88
        $region87: #{tpu_custom_call.1} parent=83 // pred_region
          %s2031 = sand.u32 %s188, 1
          %s2032 = scalar_lea.sflag [#allocation6], %s2031
          %s2033 = sand.u32 %s188, 1
          %s2034 = smul.addr %s2033, 16
          %s2035 = scalar_lea.vmem [#allocation16], %s2034
          %2036 = dma.done %s2032, 256
        $region88: #{tpu_custom_call.1} parent=83 // pred_fallthru
          _
      $region84: #{tpu_custom_call.1} parent=5 // pred_fallthru
        _
    $region6: #{tpu_custom_call.1} parent=1 // loop_footer
      %s26 = sadd.s32 1, %s22
    $region7: #{tpu_custom_call.1} parent=1 // loop_footer_branch
      %21 = sbr.rel target = $region3
    $region8: #{tpu_custom_call.1} parent=1 // loop_exit
      _
    %2037 = vsyncpa [#allocation5], 1
    %s2038 = scalar_lea.sflag [#allocation5], 1
    %2039 = vsyncpa %s2038, 1
    %2040 = vsyncpa [#allocation8], 1
    %2041 = vsyncpa [#allocation11], 1
    %2042 = vsyncpa [#allocation14], 1
    %2043 = vsyncpa [#allocation6], 1
    %s2044 = scalar_lea.sflag [#allocation6], 1
    %2045 = vsyncpa %s2044, 1

</llo_original>
